<compile_context>
chip_gen: v7x
topology: tpu7x:2x2x1
jax: 0.10.0
libtpu: 0.0.40
codegen_flags: <defaults>
</compile_context>

<pallas_src>
import jax
import jax.numpy as jnp
import numpy as np
from jax.experimental import pallas as pl
from jax.experimental.pallas import tpu as pltpu

HIGH_RES = 16                      # high-res geometry H = W
LOW_RES = 8                        # low-res (physics) grid h = w
HIGH2 = HIGH_RES * HIGH_RES        # 256 flattened high-res points
LOW2 = LOW_RES * LOW_RES           # 64 flattened low-res points
N_JACOBI = 10                      # fixed-point iterations of the physics solver
EPS = 1e-6
DX2 = (1.0 / (LOW_RES + 1)) ** 2   # dx^2 * f with unit source f = 1
B_TILE = 256                       # batch elements per grid step (multiple of 128)

# TODO(synk): PEDSModel is generic over physics_model / nn_model / downsampler / qoi;
# this kernel bakes in one concrete deterministic instantiation of each (bilinear NN,
# 2x2 average pooling, 10-step Jacobi Poisson solve, mean QoI).


def peds_kernel(xt_ref, ms_ref, c1_ref, m2_ref, c2_ref, w_ref, qoi_ref):
    # xt_ref : (HIGH2, B_TILE)    flattened high-res geometry, batch on the lane axis
    # ms_ref : (2*LOW2, HIGH2)    [kron(A1, B1^T); kron(P, P)] stacked flat operators
    # c1_ref : (LOW2, 1)          nn layer-1 bias (flattened)
    # m2_ref : (LOW2, LOW2)       kron(I8, W2^T)  -- nn layer 2 as one flat matrix
    # c2_ref : (LOW2, 1)          nn layer-2 bias (flattened)
    # w_ref  : (1, 1) in SMEM     learnable blend weight
    # qoi_ref: (1, B_TILE)        lane-dense per-sample quantity of interest
    xt = xt_ref[...]

    # ---- single stacked MXU matmul: [nn layer 1 ; avg-pool] @ x ------------------
    hz = jnp.dot(ms_ref[...], xt, preferred_element_type=jnp.float32)  # (128, B_TILE)
    h1_pre = hz[:LOW2, :]        # sublane slice at 0..63  (tile-aligned view)
    alpha_ds = hz[LOW2:, :]      # sublane slice at 64..127 (tile-aligned view)

    # ---- nn_model tail: relu -> second matmul -> sigmoid --------------------------
    h1 = jnp.maximum(h1_pre + c1_ref[...], 0.0)
    alpha_nn = jax.nn.sigmoid(
        jnp.dot(m2_ref[...], h1, preferred_element_type=jnp.float32) + c2_ref[...])

    # ---- PEDS blend: alpha = w * alpha_nn + (1 - w) * alpha_ds ---------------------
    wm = w_ref[0, 0]
    alpha = wm * alpha_nn + (1.0 - wm) * alpha_ds            # (LOW2, B_TILE)

    # ---- physics_model: Jacobi for -alpha*lap(u) = 1, u|bdry = 0 -------------------
    # Loop-invariant denominator hoisted; approx reciprocal runs on the EUP slot.
    inv_den = pl.reciprocal(4.0 * alpha + EPS, approx=True)
    base = DX2 * inv_den
    coef = alpha * inv_den

    # Low-res points are flattened row-major (l = i*8 + j) along the sublane axis.
    # Boundary masks are built once (loop-invariant, full-shape -> no in-loop bcast).
    l_idx = jax.lax.broadcasted_iota(jnp.int32, (LOW2, B_TILE), 0)
    j_idx = l_idx % LOW_RES
    has_left = j_idx > 0                   # u[i, j-1] exists
    has_right = j_idx < LOW_RES - 1        # u[i, j+1] exists
    z_row = jnp.zeros((LOW_RES, B_TILE), jnp.float32)
    z_one = jnp.zeros((1, B_TILE), jnp.float32)

    def jacobi(_, u):
        up = jnp.concatenate([z_row, u[:-LOW_RES, :]], axis=0)    # u[i-1, j] (0 at i==0)
        down = jnp.concatenate([u[LOW_RES:, :], z_row], axis=0)   # u[i+1, j] (0 at i==7)
        left = jnp.concatenate([z_one, u[:-1, :]], axis=0)        # u[i, j-1]
        right = jnp.concatenate([u[1:, :], z_one], axis=0)        # u[i, j+1]
        nsum = (up + down
                + jnp.where(has_left, left, 0.0)
                + jnp.where(has_right, right, 0.0))
        return base + coef * nsum

    u0 = jnp.zeros((LOW2, B_TILE), jnp.float32)
    u = jax.lax.fori_loop(0, N_JACOBI, jacobi, u0, unroll=True)

    # ---- qoi: per-sample mean, stored as a lane-dense row ---------------------------
    qoi_ref[...] = jnp.sum(u, axis=0, keepdims=True) * (1.0 / LOW2)


def peds_forward(x_nchw, a1, b1, c1, w2, c2, p, wmix, *, b_tile=B_TILE):
    """Pallas PEDS forward. x_nchw: (B, 1, H, W) float32. Returns qoi (B,)."""
    x = x_nchw[:, 0, :, :].astype(jnp.float32)                  # (B, 16, 16)
    batch = x.shape[0]

    # Flattened-operator form of the bilinear nn / pooling maps (wrapper-side, cheap):
    #   vec(A1 @ X @ B1)  = kron(A1, B1^T) @ vec(X)
    #   vec(H  @ W2)      = kron(I8, W2^T) @ vec(H)
    #   vec(P  @ X @ P^T) = kron(P,  P)    @ vec(X)
    m1 = jnp.kron(a1, b1.T).astype(jnp.float32)                 # (64, 256)
    md = jnp.kron(p, p).astype(jnp.float32)                     # (64, 256)
    ms = jnp.concatenate([m1, md], axis=0)                      # (128, 256) stacked op
    m2 = jnp.kron(jnp.eye(LOW_RES, dtype=jnp.float32), w2.T).astype(jnp.float32)
    c1f = c1.reshape(LOW2, 1).astype(jnp.float32)
    c2f = c2.reshape(LOW2, 1).astype(jnp.float32)
    wm = jnp.reshape(wmix, (1, 1)).astype(jnp.float32)

    # Layout plumbing: batch on lanes, flattened geometry on sublanes.
    n_tiles = pl.cdiv(batch, b_tile)
    b_pad = n_tiles * b_tile
    xt = x.reshape(batch, HIGH2).T                              # (256, B)
    xt = jnp.pad(xt, ((0, 0), (0, b_pad - batch)))              # (256, b_pad)

    out = pl.pallas_call(
        peds_kernel,
        out_shape=jax.ShapeDtypeStruct((1, b_pad), jnp.float32),
        grid=(n_tiles,),
        in_specs=[
            pl.BlockSpec((HIGH2, b_tile), lambda b: (0, b)),    # x^T batch tile
            pl.BlockSpec((2 * LOW2, HIGH2), lambda b: (0, 0)),  # stacked [M1; Md]
            pl.BlockSpec((LOW2, 1), lambda b: (0, 0)),          # c1
            pl.BlockSpec((LOW2, LOW2), lambda b: (0, 0)),       # M2
            pl.BlockSpec((LOW2, 1), lambda b: (0, 0)),          # c2
            pl.BlockSpec(memory_space=pltpu.MemorySpace.SMEM),  # blend weight w
        ],
        out_specs=pl.BlockSpec((1, b_tile), lambda b: (0, b)),  # lane-dense qoi
        compiler_params=pltpu.CompilerParams(
            dimension_semantics=("parallel",)),
    )(xt, ms, c1f, m2, c2f, wm)
    return out[0, :batch]


def peds_reference(x_nchw, a1, b1, c1, w2, c2, p, wmix):
    """Pure-JAX reference mirroring the original per-sample forward pass."""
    x = x_nchw[:, 0, :, :].astype(jnp.float32)
    w = jnp.reshape(wmix, ())
    s = jnp.eye(LOW_RES, k=1, dtype=jnp.float32)    # superdiagonal shift
    st = s.T

    def single(xb):
        h1 = jnp.maximum(a1 @ (xb @ b1) + c1, 0.0)
        alpha_nn = jax.nn.sigmoid(h1 @ w2 + c2)
        alpha_ds = p @ xb @ p.T
        alpha = w * alpha_nn + (1.0 - w) * alpha_ds
        u = jnp.zeros((LOW_RES, LOW_RES), jnp.float32)
        for _ in range(N_JACOBI):
            nsum = s @ u + st @ u + u @ s + u @ st
            u = (DX2 + alpha * nsum) / (4.0 * alpha + EPS)
        return jnp.mean(u)

    return jax.vmap(single)(x)


if __name__ == "__main__":
    key = jax.random.PRNGKey(0)
    kx, k1, k2, k3, k4, k5 = jax.random.split(key, 6)

    B = 2
    # high-res geometry (densities in [0, 1]), NCHW with C=1 like the torch model
    x = jax.random.uniform(kx, (B, 1, HIGH_RES, HIGH_RES), dtype=jnp.float32)

    # deterministic synthetic nn_model weights
    a1 = 0.1 * jax.random.normal(k1, (LOW_RES, HIGH_RES), dtype=jnp.float32)
    b1 = 0.1 * jax.random.normal(k2, (HIGH_RES, LOW_RES), dtype=jnp.float32)
    c1 = 0.1 * jax.random.normal(k3, (LOW_RES, LOW_RES), dtype=jnp.float32)
    w2 = 0.1 * jax.random.normal(k4, (LOW_RES, LOW_RES), dtype=jnp.float32)
    c2 = 0.1 * jax.random.normal(k5, (LOW_RES, LOW_RES), dtype=jnp.float32)

    # downsampler: 2x2 average pooling as P @ X @ P^T with P = kron(I8, [0.5, 0.5])
    p = jnp.kron(jnp.eye(LOW_RES, dtype=jnp.float32),
                 jnp.full((1, 2), 0.5, dtype=jnp.float32))      # (8, 16)

    # torch.nn.Parameter(torch.Tensor([0.5])) -> blend weight w
    wmix = jnp.full((1,), 0.5, dtype=jnp.float32)

    out = jax.block_until_ready(peds_forward(x, a1, b1, c1, w2, c2, p, wmix))
    ref = jax.block_until_ready(peds_reference(x, a1, b1, c1, w2, c2, p, wmix))
    np.testing.assert_allclose(np.asarray(out), np.asarray(ref), rtol=2e-3, atol=2e-3)
    print("KERNEL_OK")
</pallas_src>

<mosaic_0001>
module attributes {stable_mosaic.version = 11 : i64} {
  func.func @peds_kernel(%arg0: i32, %arg1: memref<256x256xf32, #tpu.memory_space<vmem>>, %arg2: memref<128x256xf32, #tpu.memory_space<vmem>>, %arg3: memref<64x1xf32, #tpu.memory_space<vmem>>, %arg4: memref<64x64xf32, #tpu.memory_space<vmem>>, %arg5: memref<64x1xf32, #tpu.memory_space<vmem>>, %arg6: memref<1x1xf32, #tpu.memory_space<smem>>, %arg7: memref<1x256xf32, #tpu.memory_space<vmem>>) attributes {dimension_semantics = [#tpu.dimension_semantics<parallel>], iteration_bounds = array<i64: 1>, scalar_prefetch = 0 : i64, scratch_operands = 0 : i64, tpu.core_type = #tpu.core_type<tc>, window_params = [{transform_indices = @transform_0, window_bounds = array<i64: 256, 256>}, {pipeline_mode = #tpu.pipeline_mode<synchronous>, transform_indices = @transform_1, window_bounds = array<i64: 128, 256>}, {pipeline_mode = #tpu.pipeline_mode<synchronous>, transform_indices = @transform_2, window_bounds = array<i64: 64, 1>}, {pipeline_mode = #tpu.pipeline_mode<synchronous>, transform_indices = @transform_3, window_bounds = array<i64: 64, 64>}, {pipeline_mode = #tpu.pipeline_mode<synchronous>, transform_indices = @transform_4, window_bounds = array<i64: 64, 1>}, {transform_indices = @transform_5, window_bounds = array<i64: 1, 1>}, {transform_indices = @transform_6, window_bounds = array<i64: 1, 256>}]} {
    %c0 = arith.constant 0 : index
    %c0_0 = arith.constant 0 : index
    %0 = vector.load %arg1[%c0, %c0_0] : memref<256x256xf32, #tpu.memory_space<vmem>>, vector<256x256xf32>
    %c0_1 = arith.constant 0 : index
    %c0_2 = arith.constant 0 : index
    %1 = vector.load %arg2[%c0_1, %c0_2] : memref<128x256xf32, #tpu.memory_space<vmem>>, vector<128x256xf32>
    %cst = arith.constant dense<0.000000e+00> : vector<128x256xf32>
    %2 = tpu.matmul %1, %0, %cst {dimension_numbers = #tpu.dot_dimension_numbers<[1], [0], [0], [1], [0, 0, 1, 1], [], []>} : vector<128x256xf32>, vector<256x256xf32>, vector<128x256xf32> -> vector<128x256xf32>
    %3 = vector.extract_strided_slice %2 {offsets = [0, 0], sizes = [64, 256], strides = [1, 1]} : vector<128x256xf32> to vector<64x256xf32>
    %4 = vector.extract_strided_slice %2 {offsets = [64, 0], sizes = [64, 256], strides = [1, 1]} : vector<128x256xf32> to vector<64x256xf32>
    %c0_3 = arith.constant 0 : index
    %c0_4 = arith.constant 0 : index
    %5 = vector.load %arg3[%c0_3, %c0_4] : memref<64x1xf32, #tpu.memory_space<vmem>>, vector<64x1xf32>
    %6 = vector.broadcast %5 : vector<64x1xf32> to vector<64x256xf32>
    %7 = arith.addf %3, %6 : vector<64x256xf32>
    %cst_5 = arith.constant 0.000000e+00 : f32
    %8 = vector.broadcast %cst_5 : f32 to vector<64x256xf32>
    %9 = arith.maximumf %7, %8 : vector<64x256xf32>
    %c0_6 = arith.constant 0 : index
    %c0_7 = arith.constant 0 : index
    %10 = vector.load %arg4[%c0_6, %c0_7] : memref<64x64xf32, #tpu.memory_space<vmem>>, vector<64x64xf32>
    %cst_8 = arith.constant dense<0.000000e+00> : vector<64x256xf32>
    %11 = tpu.matmul %10, %9, %cst_8 {dimension_numbers = #tpu.dot_dimension_numbers<[1], [0], [0], [1], [0, 0, 1, 1], [], []>} : vector<64x64xf32>, vector<64x256xf32>, vector<64x256xf32> -> vector<64x256xf32>
    %c0_9 = arith.constant 0 : index
    %c0_10 = arith.constant 0 : index
    %12 = vector.load %arg5[%c0_9, %c0_10] : memref<64x1xf32, #tpu.memory_space<vmem>>, vector<64x1xf32>
    %13 = vector.broadcast %12 : vector<64x1xf32> to vector<64x256xf32>
    %14 = arith.addf %11, %13 : vector<64x256xf32>
    %15 = arith.negf %14 : vector<64x256xf32>
    %16 = math.exp %15 : vector<64x256xf32>
    %cst_11 = arith.constant 1.000000e+00 : f32
    %17 = vector.broadcast %cst_11 : f32 to vector<64x256xf32>
    %18 = arith.addf %17, %16 : vector<64x256xf32>
    %19 = arith.divf %17, %18 : vector<64x256xf32>
    %c0_12 = arith.constant 0 : index
    %c0_13 = arith.constant 0 : index
    %20 = memref.load %arg6[%c0_12, %c0_13] : memref<1x1xf32, #tpu.memory_space<smem>>
    %21 = vector.broadcast %20 : f32 to vector<64x256xf32>
    %22 = arith.mulf %21, %19 : vector<64x256xf32>
    %cst_14 = arith.constant 1.000000e+00 : f32
    %23 = arith.subf %cst_14, %20 : f32
    %24 = vector.broadcast %23 : f32 to vector<64x256xf32>
    %25 = arith.mulf %24, %4 : vector<64x256xf32>
    %26 = arith.addf %22, %25 : vector<64x256xf32>
    %cst_15 = arith.constant 4.000000e+00 : f32
    %27 = vector.broadcast %cst_15 : f32 to vector<64x256xf32>
    %28 = arith.mulf %27, %26 : vector<64x256xf32>
    %cst_16 = arith.constant 9.99999997E-7 : f32
    %29 = vector.broadcast %cst_16 : f32 to vector<64x256xf32>
    %30 = arith.addf %28, %29 : vector<64x256xf32>
    %31 = tpu.reciprocal %30 {approx = true} : vector<64x256xf32> -> vector<64x256xf32>
    %cst_17 = arith.constant 0.0123456791 : f32
    %32 = vector.broadcast %cst_17 : f32 to vector<64x256xf32>
    %33 = arith.mulf %32, %31 : vector<64x256xf32>
    %34 = arith.mulf %26, %31 : vector<64x256xf32>
    %35 = tpu.iota {dimensions = array<i32: 0>} : vector<64x256xi32>
    %c8_i32 = arith.constant 8 : i32
    %c0_i32 = arith.constant 0 : i32
    %36 = arith.cmpi eq, %c8_i32, %c0_i32 : i32
    %c1_i32 = arith.constant 1 : i32
    %37 = arith.select %36, %c1_i32, %c8_i32 : i32
    %38 = vector.broadcast %37 : i32 to vector<64x256xi32>
    %39 = arith.remsi %35, %38 : vector<64x256xi32>
    %c0_i32_18 = arith.constant 0 : i32
    %40 = vector.broadcast %c0_i32_18 : i32 to vector<64x256xi32>
    %41 = arith.cmpi ne, %39, %40 : vector<64x256xi32>
    %c0_i32_19 = arith.constant 0 : i32
    %42 = vector.broadcast %c0_i32_19 : i32 to vector<64x256xi32>
    %43 = arith.cmpi slt, %39, %42 : vector<64x256xi32>
    %c0_i32_20 = arith.constant 0 : i32
    %44 = arith.cmpi slt, %37, %c0_i32_20 : i32
    %45 = vector.broadcast %44 : i1 to vector<64x256xi1>
    %46 = vector.broadcast %45 : vector<64x256xi1> to vector<64x256xi1>
    %47 = arith.xori %43, %46 : vector<64x256xi1>
    %48 = arith.andi %47, %41 : vector<64x256xi1>
    %49 = vector.broadcast %37 : i32 to vector<64x256xi32>
    %50 = arith.addi %39, %49 : vector<64x256xi32>
    %51 = arith.select %48, %50, %39 : vector<64x256xi1>, vector<64x256xi32>
    %c0_i32_21 = arith.constant 0 : i32
    %52 = vector.broadcast %c0_i32_21 : i32 to vector<64x256xi32>
    %53 = arith.cmpi sgt, %51, %52 : vector<64x256xi32>
    %c7_i32 = arith.constant 7 : i32
    %54 = vector.broadcast %c7_i32 : i32 to vector<64x256xi32>
    %55 = arith.cmpi slt, %51, %54 : vector<64x256xi32>
    %cst_22 = arith.constant 0.000000e+00 : f32
    %56 = vector.broadcast %cst_22 : f32 to vector<8x256xf32>
    %cst_23 = arith.constant 0.000000e+00 : f32
    %57 = vector.broadcast %cst_23 : f32 to vector<1x256xf32>
    %cst_24 = arith.constant 0.000000e+00 : f32
    %58 = vector.broadcast %cst_24 : f32 to vector<64x256xf32>
    %c0_i32_25 = arith.constant 0 : i32
    %59 = vector.extract_strided_slice %58 {offsets = [0, 0], sizes = [56, 256], strides = [1, 1]} : vector<64x256xf32> to vector<56x256xf32>
    %60 = tpu.concatenate %56, %59 in 0 : vector<8x256xf32>, vector<56x256xf32> -> vector<64x256xf32>
    %61 = vector.extract_strided_slice %58 {offsets = [8, 0], sizes = [56, 256], strides = [1, 1]} : vector<64x256xf32> to vector<56x256xf32>
    %62 = tpu.concatenate %61, %56 in 0 : vector<56x256xf32>, vector<8x256xf32> -> vector<64x256xf32>
    %63 = vector.extract_strided_slice %58 {offsets = [0, 0], sizes = [63, 256], strides = [1, 1]} : vector<64x256xf32> to vector<63x256xf32>
    %64 = tpu.concatenate %57, %63 in 0 : vector<1x256xf32>, vector<63x256xf32> -> vector<64x256xf32>
    %65 = vector.extract_strided_slice %58 {offsets = [1, 0], sizes = [63, 256], strides = [1, 1]} : vector<64x256xf32> to vector<63x256xf32>
    %66 = tpu.concatenate %65, %57 in 0 : vector<63x256xf32>, vector<1x256xf32> -> vector<64x256xf32>
    %67 = arith.addf %60, %62 : vector<64x256xf32>
    %cst_26 = arith.constant 0.000000e+00 : f32
    %68 = vector.broadcast %cst_26 : f32 to vector<64x256xf32>
    %69 = arith.select %53, %64, %68 : vector<64x256xi1>, vector<64x256xf32>
    %70 = arith.addf %67, %69 : vector<64x256xf32>
    %cst_27 = arith.constant 0.000000e+00 : f32
    %71 = vector.broadcast %cst_27 : f32 to vector<64x256xf32>
    %72 = arith.select %55, %66, %71 : vector<64x256xi1>, vector<64x256xf32>
    %73 = arith.addf %70, %72 : vector<64x256xf32>
    %74 = arith.mulf %34, %73 : vector<64x256xf32>
    %75 = arith.addf %33, %74 : vector<64x256xf32>
    %c1_i32_28 = arith.constant 1 : i32
    %76 = vector.extract_strided_slice %75 {offsets = [0, 0], sizes = [56, 256], strides = [1, 1]} : vector<64x256xf32> to vector<56x256xf32>
    %77 = tpu.concatenate %56, %76 in 0 : vector<8x256xf32>, vector<56x256xf32> -> vector<64x256xf32>
    %78 = vector.extract_strided_slice %75 {offsets = [8, 0], sizes = [56, 256], strides = [1, 1]} : vector<64x256xf32> to vector<56x256xf32>
    %79 = tpu.concatenate %78, %56 in 0 : vector<56x256xf32>, vector<8x256xf32> -> vector<64x256xf32>
    %80 = vector.extract_strided_slice %75 {offsets = [0, 0], sizes = [63, 256], strides = [1, 1]} : vector<64x256xf32> to vector<63x256xf32>
    %81 = tpu.concatenate %57, %80 in 0 : vector<1x256xf32>, vector<63x256xf32> -> vector<64x256xf32>
    %82 = vector.extract_strided_slice %75 {offsets = [1, 0], sizes = [63, 256], strides = [1, 1]} : vector<64x256xf32> to vector<63x256xf32>
    %83 = tpu.concatenate %82, %57 in 0 : vector<63x256xf32>, vector<1x256xf32> -> vector<64x256xf32>
    %84 = arith.addf %77, %79 : vector<64x256xf32>
    %cst_29 = arith.constant 0.000000e+00 : f32
    %85 = vector.broadcast %cst_29 : f32 to vector<64x256xf32>
    %86 = arith.select %53, %81, %85 : vector<64x256xi1>, vector<64x256xf32>
    %87 = arith.addf %84, %86 : vector<64x256xf32>
    %cst_30 = arith.constant 0.000000e+00 : f32
    %88 = vector.broadcast %cst_30 : f32 to vector<64x256xf32>
    %89 = arith.select %55, %83, %88 : vector<64x256xi1>, vector<64x256xf32>
    %90 = arith.addf %87, %89 : vector<64x256xf32>
    %91 = arith.mulf %34, %90 : vector<64x256xf32>
    %92 = arith.addf %33, %91 : vector<64x256xf32>
    %c2_i32 = arith.constant 2 : i32
    %93 = vector.extract_strided_slice %92 {offsets = [0, 0], sizes = [56, 256], strides = [1, 1]} : vector<64x256xf32> to vector<56x256xf32>
    %94 = tpu.concatenate %56, %93 in 0 : vector<8x256xf32>, vector<56x256xf32> -> vector<64x256xf32>
    %95 = vector.extract_strided_slice %92 {offsets = [8, 0], sizes = [56, 256], strides = [1, 1]} : vector<64x256xf32> to vector<56x256xf32>
    %96 = tpu.concatenate %95, %56 in 0 : vector<56x256xf32>, vector<8x256xf32> -> vector<64x256xf32>
    %97 = vector.extract_strided_slice %92 {offsets = [0, 0], sizes = [63, 256], strides = [1, 1]} : vector<64x256xf32> to vector<63x256xf32>
    %98 = tpu.concatenate %57, %97 in 0 : vector<1x256xf32>, vector<63x256xf32> -> vector<64x256xf32>
    %99 = vector.extract_strided_slice %92 {offsets = [1, 0], sizes = [63, 256], strides = [1, 1]} : vector<64x256xf32> to vector<63x256xf32>
    %100 = tpu.concatenate %99, %57 in 0 : vector<63x256xf32>, vector<1x256xf32> -> vector<64x256xf32>
    %101 = arith.addf %94, %96 : vector<64x256xf32>
    %cst_31 = arith.constant 0.000000e+00 : f32
    %102 = vector.broadcast %cst_31 : f32 to vector<64x256xf32>
    %103 = arith.select %53, %98, %102 : vector<64x256xi1>, vector<64x256xf32>
    %104 = arith.addf %101, %103 : vector<64x256xf32>
    %cst_32 = arith.constant 0.000000e+00 : f32
    %105 = vector.broadcast %cst_32 : f32 to vector<64x256xf32>
    %106 = arith.select %55, %100, %105 : vector<64x256xi1>, vector<64x256xf32>
    %107 = arith.addf %104, %106 : vector<64x256xf32>
    %108 = arith.mulf %34, %107 : vector<64x256xf32>
    %109 = arith.addf %33, %108 : vector<64x256xf32>
    %c3_i32 = arith.constant 3 : i32
    %110 = vector.extract_strided_slice %109 {offsets = [0, 0], sizes = [56, 256], strides = [1, 1]} : vector<64x256xf32> to vector<56x256xf32>
    %111 = tpu.concatenate %56, %110 in 0 : vector<8x256xf32>, vector<56x256xf32> -> vector<64x256xf32>
    %112 = vector.extract_strided_slice %109 {offsets = [8, 0], sizes = [56, 256], strides = [1, 1]} : vector<64x256xf32> to vector<56x256xf32>
    %113 = tpu.concatenate %112, %56 in 0 : vector<56x256xf32>, vector<8x256xf32> -> vector<64x256xf32>
    %114 = vector.extract_strided_slice %109 {offsets = [0, 0], sizes = [63, 256], strides = [1, 1]} : vector<64x256xf32> to vector<63x256xf32>
    %115 = tpu.concatenate %57, %114 in 0 : vector<1x256xf32>, vector<63x256xf32> -> vector<64x256xf32>
    %116 = vector.extract_strided_slice %109 {offsets = [1, 0], sizes = [63, 256], strides = [1, 1]} : vector<64x256xf32> to vector<63x256xf32>
    %117 = tpu.concatenate %116, %57 in 0 : vector<63x256xf32>, vector<1x256xf32> -> vector<64x256xf32>
    %118 = arith.addf %111, %113 : vector<64x256xf32>
    %cst_33 = arith.constant 0.000000e+00 : f32
    %119 = vector.broadcast %cst_33 : f32 to vector<64x256xf32>
    %120 = arith.select %53, %115, %119 : vector<64x256xi1>, vector<64x256xf32>
    %121 = arith.addf %118, %120 : vector<64x256xf32>
    %cst_34 = arith.constant 0.000000e+00 : f32
    %122 = vector.broadcast %cst_34 : f32 to vector<64x256xf32>
    %123 = arith.select %55, %117, %122 : vector<64x256xi1>, vector<64x256xf32>
    %124 = arith.addf %121, %123 : vector<64x256xf32>
    %125 = arith.mulf %34, %124 : vector<64x256xf32>
    %126 = arith.addf %33, %125 : vector<64x256xf32>
    %c4_i32 = arith.constant 4 : i32
    %127 = vector.extract_strided_slice %126 {offsets = [0, 0], sizes = [56, 256], strides = [1, 1]} : vector<64x256xf32> to vector<56x256xf32>
    %128 = tpu.concatenate %56, %127 in 0 : vector<8x256xf32>, vector<56x256xf32> -> vector<64x256xf32>
    %129 = vector.extract_strided_slice %126 {offsets = [8, 0], sizes = [56, 256], strides = [1, 1]} : vector<64x256xf32> to vector<56x256xf32>
    %130 = tpu.concatenate %129, %56 in 0 : vector<56x256xf32>, vector<8x256xf32> -> vector<64x256xf32>
    %131 = vector.extract_strided_slice %126 {offsets = [0, 0], sizes = [63, 256], strides = [1, 1]} : vector<64x256xf32> to vector<63x256xf32>
    %132 = tpu.concatenate %57, %131 in 0 : vector<1x256xf32>, vector<63x256xf32> -> vector<64x256xf32>
    %133 = vector.extract_strided_slice %126 {offsets = [1, 0], sizes = [63, 256], strides = [1, 1]} : vector<64x256xf32> to vector<63x256xf32>
    %134 = tpu.concatenate %133, %57 in 0 : vector<63x256xf32>, vector<1x256xf32> -> vector<64x256xf32>
    %135 = arith.addf %128, %130 : vector<64x256xf32>
    %cst_35 = arith.constant 0.000000e+00 : f32
    %136 = vector.broadcast %cst_35 : f32 to vector<64x256xf32>
    %137 = arith.select %53, %132, %136 : vector<64x256xi1>, vector<64x256xf32>
    %138 = arith.addf %135, %137 : vector<64x256xf32>
    %cst_36 = arith.constant 0.000000e+00 : f32
    %139 = vector.broadcast %cst_36 : f32 to vector<64x256xf32>
    %140 = arith.select %55, %134, %139 : vector<64x256xi1>, vector<64x256xf32>
    %141 = arith.addf %138, %140 : vector<64x256xf32>
    %142 = arith.mulf %34, %141 : vector<64x256xf32>
    %143 = arith.addf %33, %142 : vector<64x256xf32>
    %c5_i32 = arith.constant 5 : i32
    %144 = vector.extract_strided_slice %143 {offsets = [0, 0], sizes = [56, 256], strides = [1, 1]} : vector<64x256xf32> to vector<56x256xf32>
    %145 = tpu.concatenate %56, %144 in 0 : vector<8x256xf32>, vector<56x256xf32> -> vector<64x256xf32>
    %146 = vector.extract_strided_slice %143 {offsets = [8, 0], sizes = [56, 256], strides = [1, 1]} : vector<64x256xf32> to vector<56x256xf32>
    %147 = tpu.concatenate %146, %56 in 0 : vector<56x256xf32>, vector<8x256xf32> -> vector<64x256xf32>
    %148 = vector.extract_strided_slice %143 {offsets = [0, 0], sizes = [63, 256], strides = [1, 1]} : vector<64x256xf32> to vector<63x256xf32>
    %149 = tpu.concatenate %57, %148 in 0 : vector<1x256xf32>, vector<63x256xf32> -> vector<64x256xf32>
    %150 = vector.extract_strided_slice %143 {offsets = [1, 0], sizes = [63, 256], strides = [1, 1]} : vector<64x256xf32> to vector<63x256xf32>
    %151 = tpu.concatenate %150, %57 in 0 : vector<63x256xf32>, vector<1x256xf32> -> vector<64x256xf32>
    %152 = arith.addf %145, %147 : vector<64x256xf32>
    %cst_37 = arith.constant 0.000000e+00 : f32
    %153 = vector.broadcast %cst_37 : f32 to vector<64x256xf32>
    %154 = arith.select %53, %149, %153 : vector<64x256xi1>, vector<64x256xf32>
    %155 = arith.addf %152, %154 : vector<64x256xf32>
    %cst_38 = arith.constant 0.000000e+00 : f32
    %156 = vector.broadcast %cst_38 : f32 to vector<64x256xf32>
    %157 = arith.select %55, %151, %156 : vector<64x256xi1>, vector<64x256xf32>
    %158 = arith.addf %155, %157 : vector<64x256xf32>
    %159 = arith.mulf %34, %158 : vector<64x256xf32>
    %160 = arith.addf %33, %159 : vector<64x256xf32>
    %c6_i32 = arith.constant 6 : i32
    %161 = vector.extract_strided_slice %160 {offsets = [0, 0], sizes = [56, 256], strides = [1, 1]} : vector<64x256xf32> to vector<56x256xf32>
    %162 = tpu.concatenate %56, %161 in 0 : vector<8x256xf32>, vector<56x256xf32> -> vector<64x256xf32>
    %163 = vector.extract_strided_slice %160 {offsets = [8, 0], sizes = [56, 256], strides = [1, 1]} : vector<64x256xf32> to vector<56x256xf32>
    %164 = tpu.concatenate %163, %56 in 0 : vector<56x256xf32>, vector<8x256xf32> -> vector<64x256xf32>
    %165 = vector.extract_strided_slice %160 {offsets = [0, 0], sizes = [63, 256], strides = [1, 1]} : vector<64x256xf32> to vector<63x256xf32>
    %166 = tpu.concatenate %57, %165 in 0 : vector<1x256xf32>, vector<63x256xf32> -> vector<64x256xf32>
    %167 = vector.extract_strided_slice %160 {offsets = [1, 0], sizes = [63, 256], strides = [1, 1]} : vector<64x256xf32> to vector<63x256xf32>
    %168 = tpu.concatenate %167, %57 in 0 : vector<63x256xf32>, vector<1x256xf32> -> vector<64x256xf32>
    %169 = arith.addf %162, %164 : vector<64x256xf32>
    %cst_39 = arith.constant 0.000000e+00 : f32
    %170 = vector.broadcast %cst_39 : f32 to vector<64x256xf32>
    %171 = arith.select %53, %166, %170 : vector<64x256xi1>, vector<64x256xf32>
    %172 = arith.addf %169, %171 : vector<64x256xf32>
    %cst_40 = arith.constant 0.000000e+00 : f32
    %173 = vector.broadcast %cst_40 : f32 to vector<64x256xf32>
    %174 = arith.select %55, %168, %173 : vector<64x256xi1>, vector<64x256xf32>
    %175 = arith.addf %172, %174 : vector<64x256xf32>
    %176 = arith.mulf %34, %175 : vector<64x256xf32>
    %177 = arith.addf %33, %176 : vector<64x256xf32>
    %c7_i32_41 = arith.constant 7 : i32
    %178 = vector.extract_strided_slice %177 {offsets = [0, 0], sizes = [56, 256], strides = [1, 1]} : vector<64x256xf32> to vector<56x256xf32>
    %179 = tpu.concatenate %56, %178 in 0 : vector<8x256xf32>, vector<56x256xf32> -> vector<64x256xf32>
    %180 = vector.extract_strided_slice %177 {offsets = [8, 0], sizes = [56, 256], strides = [1, 1]} : vector<64x256xf32> to vector<56x256xf32>
    %181 = tpu.concatenate %180, %56 in 0 : vector<56x256xf32>, vector<8x256xf32> -> vector<64x256xf32>
    %182 = vector.extract_strided_slice %177 {offsets = [0, 0], sizes = [63, 256], strides = [1, 1]} : vector<64x256xf32> to vector<63x256xf32>
    %183 = tpu.concatenate %57, %182 in 0 : vector<1x256xf32>, vector<63x256xf32> -> vector<64x256xf32>
    %184 = vector.extract_strided_slice %177 {offsets = [1, 0], sizes = [63, 256], strides = [1, 1]} : vector<64x256xf32> to vector<63x256xf32>
    %185 = tpu.concatenate %184, %57 in 0 : vector<63x256xf32>, vector<1x256xf32> -> vector<64x256xf32>
    %186 = arith.addf %179, %181 : vector<64x256xf32>
    %cst_42 = arith.constant 0.000000e+00 : f32
    %187 = vector.broadcast %cst_42 : f32 to vector<64x256xf32>
    %188 = arith.select %53, %183, %187 : vector<64x256xi1>, vector<64x256xf32>
    %189 = arith.addf %186, %188 : vector<64x256xf32>
    %cst_43 = arith.constant 0.000000e+00 : f32
    %190 = vector.broadcast %cst_43 : f32 to vector<64x256xf32>
    %191 = arith.select %55, %185, %190 : vector<64x256xi1>, vector<64x256xf32>
    %192 = arith.addf %189, %191 : vector<64x256xf32>
    %193 = arith.mulf %34, %192 : vector<64x256xf32>
    %194 = arith.addf %33, %193 : vector<64x256xf32>
    %c8_i32_44 = arith.constant 8 : i32
    %195 = vector.extract_strided_slice %194 {offsets = [0, 0], sizes = [56, 256], strides = [1, 1]} : vector<64x256xf32> to vector<56x256xf32>
    %196 = tpu.concatenate %56, %195 in 0 : vector<8x256xf32>, vector<56x256xf32> -> vector<64x256xf32>
    %197 = vector.extract_strided_slice %194 {offsets = [8, 0], sizes = [56, 256], strides = [1, 1]} : vector<64x256xf32> to vector<56x256xf32>
    %198 = tpu.concatenate %197, %56 in 0 : vector<56x256xf32>, vector<8x256xf32> -> vector<64x256xf32>
    %199 = vector.extract_strided_slice %194 {offsets = [0, 0], sizes = [63, 256], strides = [1, 1]} : vector<64x256xf32> to vector<63x256xf32>
    %200 = tpu.concatenate %57, %199 in 0 : vector<1x256xf32>, vector<63x256xf32> -> vector<64x256xf32>
    %201 = vector.extract_strided_slice %194 {offsets = [1, 0], sizes = [63, 256], strides = [1, 1]} : vector<64x256xf32> to vector<63x256xf32>
    %202 = tpu.concatenate %201, %57 in 0 : vector<63x256xf32>, vector<1x256xf32> -> vector<64x256xf32>
    %203 = arith.addf %196, %198 : vector<64x256xf32>
    %cst_45 = arith.constant 0.000000e+00 : f32
    %204 = vector.broadcast %cst_45 : f32 to vector<64x256xf32>
    %205 = arith.select %53, %200, %204 : vector<64x256xi1>, vector<64x256xf32>
    %206 = arith.addf %203, %205 : vector<64x256xf32>
    %cst_46 = arith.constant 0.000000e+00 : f32
    %207 = vector.broadcast %cst_46 : f32 to vector<64x256xf32>
    %208 = arith.select %55, %202, %207 : vector<64x256xi1>, vector<64x256xf32>
    %209 = arith.addf %206, %208 : vector<64x256xf32>
    %210 = arith.mulf %34, %209 : vector<64x256xf32>
    %211 = arith.addf %33, %210 : vector<64x256xf32>
    %c9_i32 = arith.constant 9 : i32
    %212 = vector.extract_strided_slice %211 {offsets = [0, 0], sizes = [56, 256], strides = [1, 1]} : vector<64x256xf32> to vector<56x256xf32>
    %213 = tpu.concatenate %56, %212 in 0 : vector<8x256xf32>, vector<56x256xf32> -> vector<64x256xf32>
    %214 = vector.extract_strided_slice %211 {offsets = [8, 0], sizes = [56, 256], strides = [1, 1]} : vector<64x256xf32> to vector<56x256xf32>
    %215 = tpu.concatenate %214, %56 in 0 : vector<56x256xf32>, vector<8x256xf32> -> vector<64x256xf32>
    %216 = vector.extract_strided_slice %211 {offsets = [0, 0], sizes = [63, 256], strides = [1, 1]} : vector<64x256xf32> to vector<63x256xf32>
    %217 = tpu.concatenate %57, %216 in 0 : vector<1x256xf32>, vector<63x256xf32> -> vector<64x256xf32>
    %218 = vector.extract_strided_slice %211 {offsets = [1, 0], sizes = [63, 256], strides = [1, 1]} : vector<64x256xf32> to vector<63x256xf32>
    %219 = tpu.concatenate %218, %57 in 0 : vector<63x256xf32>, vector<1x256xf32> -> vector<64x256xf32>
    %220 = arith.addf %213, %215 : vector<64x256xf32>
    %cst_47 = arith.constant 0.000000e+00 : f32
    %221 = vector.broadcast %cst_47 : f32 to vector<64x256xf32>
    %222 = arith.select %53, %217, %221 : vector<64x256xi1>, vector<64x256xf32>
    %223 = arith.addf %220, %222 : vector<64x256xf32>
    %cst_48 = arith.constant 0.000000e+00 : f32
    %224 = vector.broadcast %cst_48 : f32 to vector<64x256xf32>
    %225 = arith.select %55, %219, %224 : vector<64x256xi1>, vector<64x256xf32>
    %226 = arith.addf %223, %225 : vector<64x256xf32>
    %227 = arith.mulf %34, %226 : vector<64x256xf32>
    %228 = arith.addf %33, %227 : vector<64x256xf32>
    %cst_49 = arith.constant dense<0.000000e+00> : vector<256xf32>
    %229 = vector.multi_reduction <add>, %228, %cst_49 [0] : vector<64x256xf32> to vector<256xf32>
    %230 = vector.shape_cast %229 : vector<256xf32> to vector<1x256xf32>
    %cst_50 = arith.constant 1.562500e-02 : f32
    %231 = vector.broadcast %cst_50 : f32 to vector<1x256xf32>
    %232 = arith.mulf %230, %231 : vector<1x256xf32>
    %c0_51 = arith.constant 0 : index
    %c0_52 = arith.constant 0 : index
    %233 = vector.load %arg7[%c0_51, %c0_52] : memref<1x256xf32, #tpu.memory_space<vmem>>, vector<1x256xf32>
    tpu.vector_store %arg7[%c0_51, %c0_52], %232 {strides = array<i32>} : memref<1x256xf32, #tpu.memory_space<vmem>>, vector<1x256xf32>,
    return
  }
  func.func @transform_0(%arg0: i32) -> (i32, i32) {
    %c0_i32 = arith.constant 0 : i32
    %c0_i32_0 = arith.constant 0 : i32
    return %c0_i32, %arg0 : i32, i32
  }
  func.func @transform_1(%arg0: i32) -> (i32, i32) {
    %c0_i32 = arith.constant 0 : i32
    %c0_i32_0 = arith.constant 0 : i32
    %c0_i32_1 = arith.constant 0 : i32
    return %c0_i32, %c0_i32_0 : i32, i32
  }
  func.func @transform_2(%arg0: i32) -> (i32, i32) {
    %c0_i32 = arith.constant 0 : i32
    %c0_i32_0 = arith.constant 0 : i32
    %c0_i32_1 = arith.constant 0 : i32
    return %c0_i32, %c0_i32_0 : i32, i32
  }
  func.func @transform_3(%arg0: i32) -> (i32, i32) {
    %c0_i32 = arith.constant 0 : i32
    %c0_i32_0 = arith.constant 0 : i32
    %c0_i32_1 = arith.constant 0 : i32
    return %c0_i32, %c0_i32_0 : i32, i32
  }
  func.func @transform_4(%arg0: i32) -> (i32, i32) {
    %c0_i32 = arith.constant 0 : i32
    %c0_i32_0 = arith.constant 0 : i32
    %c0_i32_1 = arith.constant 0 : i32
    return %c0_i32, %c0_i32_0 : i32, i32
  }
  func.func @transform_5(%arg0: i32) -> (i32, i32) {
    %c0_i32 = arith.constant 0 : i32
    %c0_i32_0 = arith.constant 0 : i32
    %c0_i32_1 = arith.constant 0 : i32
    return %c0_i32, %c0_i32_0 : i32, i32
  }
  func.func @transform_6(%arg0: i32) -> (i32, i32) {
    %c0_i32 = arith.constant 0 : i32
    %c0_i32_0 = arith.constant 0 : i32
    return %c0_i32, %arg0 : i32, i32
  }
}

</mosaic_0001>

<llo_original>
// kernel: tpu_custom_call.1
$region0: #{tpu_custom_call.1}
  #allocation0 [shape = 'u32[]', space=smem, size = 0x4, offset = 0x4, fixed_abs, tag = 'smem constant byte address 0x4 - core index']
  #allocation1 [shape = 'u32[144,128]{1,0:T(1,128)}', space=vmem, size = 0x12000, scoped, tag = 'internal scratch']
  #allocation2 [shape = 'f32[1,1]{1,0:T(1,128)S(6)}', space=smem, size = 0x200, scoped, tag = 'scoped memory for tpu_custom_call.1']
  %s0 = inlined_call_operand.hbm [shape: f32[256,256], index: 0, kind: input, shape index: {}]
  %s1 = inlined_call_operand.hbm [shape: f32[128,256], index: 1, kind: input, shape index: {}]
  %s2 = inlined_call_operand.vmem [shape: f32[64,1], index: 2, kind: input, shape index: {}]
  %s3 = inlined_call_operand.vmem [shape: f32[64,64], index: 3, kind: input, shape index: {}]
  %s4 = inlined_call_operand.vmem [shape: f32[64,1], index: 4, kind: input, shape index: {}]
  %s5 = inlined_call_operand.<no memory space> [shape: f32[1,1], index: 5, kind: input, shape index: {}]
  %s6 = inlined_call_operand.hbm [shape: f32[1,256], index: 6, kind: output, shape index: {}]
  %s7 = sld [smem:[#allocation0]]
  $region42: #{tpu_custom_call.1} parent=0
    _
  %s9 = ssub.s32 1, %s7
  %s10 = scalar_select 0, %s9, %s7
  %11 = sst [smem:[#allocation2]] %s5
  $region1: #{tpu_custom_call.1} parent=0
    #allocation3 [shape = 'u8[262144]{0}', space=vmem, size = 0x40000, scoped, tag = 'input window, operand 0, single buffered']
    #allocation4 [shape = 's32[1]{0}', space=sflag, size = 0x4, scoped, tag = 'scoped memory for tpu_custom_call.1']
    #allocation5 [shape = 's32[1]{0}', space=sflag, size = 0x4, scoped, tag = 'scoped memory for tpu_custom_call.1']
    #allocation6 [shape = 'u8[131072]{0}', space=vmem, size = 0x20000, scoped, tag = 'input window, operand 1, single buffered']
    #allocation7 [shape = 's32[1]{0}', space=sflag, size = 0x4, scoped, tag = 'scoped memory for tpu_custom_call.1']
    #allocation8 [shape = 'u8[1024]{0}', space=vmem, size = 0x400, scoped, tag = 'output window, operand 0, single buffered']
    %12 = vsyncpa [#allocation4], 0
    %13 = vsyncpa [#allocation7], 0
    %14 = vsyncpa [#allocation5], 0
    // Predicated region
    $region2: #{tpu_custom_call.1} parent=1 // pred_check
      _
    $region3: #{tpu_custom_call.1} parent=1 // pred_check_branch
      %16 = sbr.rel (0) target = $region5
    $region4: #{tpu_custom_call.1} parent=1 // pred_region
      %s18 = ssub.s32 8192, 8192
      %19 = vsyncadd [#allocation4], %s18
      %s20 = sshll.u32 [#allocation3], 4
      %s21 = int_to_ptr.vmem [resolvable:$true] %s20
      %26 = dma.hbm_to_vmem [thread:$0]  %s0, 8192, %s21, [#allocation4], 256, 256, 16
    $region5: #{tpu_custom_call.1} parent=1 // pred_fallthru
      _
    // Predicated region
    $region6: #{tpu_custom_call.1} parent=1 // pred_check
      _
    $region7: #{tpu_custom_call.1} parent=1 // pred_check_branch
      %28 = sbr.rel (0) target = $region9
    $region8: #{tpu_custom_call.1} parent=1 // pred_region
      %s30 = ssub.s32 4096, 4096
      %31 = vsyncadd [#allocation7], %s30
      %s32 = sshll.u32 [#allocation6], 4
      %s33 = int_to_ptr.vmem [resolvable:$true] %s32
      %38 = dma.hbm_to_vmem [thread:$0]  %s1, 4096, %s33, [#allocation7], 256, 256, 16
    $region9: #{tpu_custom_call.1} parent=1 // pred_fallthru
      _
    // Predicated region
    $region10: #{tpu_custom_call.1} parent=1 // pred_check
      _
    $region11: #{tpu_custom_call.1} parent=1 // pred_check_branch
      %40 = sbr.rel (0) target = $region13
    $region12: #{tpu_custom_call.1} parent=1 // pred_region
      _
    $region13: #{tpu_custom_call.1} parent=1 // pred_fallthru
      _
    // Predicated region
    $region14: #{tpu_custom_call.1} parent=1 // pred_check
      _
    $region15: #{tpu_custom_call.1} parent=1 // pred_check_branch
      %42 = sbr.rel (0) target = $region17
    $region16: #{tpu_custom_call.1} parent=1 // pred_region
      _
    $region17: #{tpu_custom_call.1} parent=1 // pred_fallthru
      _
    // Predicated region
    $region18: #{tpu_custom_call.1} parent=1 // pred_check
      _
    $region19: #{tpu_custom_call.1} parent=1 // pred_check_branch
      %44 = sbr.rel (0) target = $region21
    $region20: #{tpu_custom_call.1} parent=1 // pred_region
      _
    $region21: #{tpu_custom_call.1} parent=1 // pred_fallthru
      _
    // Predicated region
    $region22: #{tpu_custom_call.1} parent=1 // pred_check
      _
    $region23: #{tpu_custom_call.1} parent=1 // pred_check_branch
      %46 = sbr.rel (0) target = $region25
    $region24: #{tpu_custom_call.1} parent=1 // pred_region
      _
    $region25: #{tpu_custom_call.1} parent=1 // pred_fallthru
      _
    // Predicated region
    $region26: #{tpu_custom_call.1} parent=1 // pred_check
      _
    $region27: #{tpu_custom_call.1} parent=1 // pred_check_branch
      %48 = sbr.rel (0) target = $region29
    $region28: #{tpu_custom_call.1} parent=1 // pred_region
      %49 = dma.done [#allocation4], 8192
    $region29: #{tpu_custom_call.1} parent=1 // pred_fallthru
      _
    // Predicated region
    $region30: #{tpu_custom_call.1} parent=1 // pred_check
      _
    $region31: #{tpu_custom_call.1} parent=1 // pred_check_branch
      %51 = sbr.rel (0) target = $region33
    $region32: #{tpu_custom_call.1} parent=1 // pred_region
      %52 = dma.done [#allocation7], 4096
    $region33: #{tpu_custom_call.1} parent=1 // pred_fallthru
      _
    %v53 = vld [vmem:[#allocation3] sm:$0xff]
    %v54 = vld [vmem:[#allocation3 + $0x8] sm:$0xff]
    %v55 = vld [vmem:[#allocation3 + $0x10] sm:$0xff]
    %v56 = vld [vmem:[#allocation3 + $0x18] sm:$0xff]
    %v57 = vld [vmem:[#allocation3 + $0x20] sm:$0xff]
    %v58 = vld [vmem:[#allocation3 + $0x28] sm:$0xff]
    %v59 = vld [vmem:[#allocation3 + $0x30] sm:$0xff]
    %v60 = vld [vmem:[#allocation3 + $0x38] sm:$0xff]
    %v61 = vld [vmem:[#allocation3 + $0x40] sm:$0xff]
    %v62 = vld [vmem:[#allocation3 + $0x48] sm:$0xff]
    %v63 = vld [vmem:[#allocation3 + $0x50] sm:$0xff]
    %v64 = vld [vmem:[#allocation3 + $0x58] sm:$0xff]
    %v65 = vld [vmem:[#allocation3 + $0x60] sm:$0xff]
    %v66 = vld [vmem:[#allocation3 + $0x68] sm:$0xff]
    %v67 = vld [vmem:[#allocation3 + $0x70] sm:$0xff]
    %v68 = vld [vmem:[#allocation3 + $0x78] sm:$0xff]
    %v69 = vld [vmem:[#allocation3 + $0x80] sm:$0xff]
    %v70 = vld [vmem:[#allocation3 + $0x88] sm:$0xff]
    %v71 = vld [vmem:[#allocation3 + $0x90] sm:$0xff]
    %v72 = vld [vmem:[#allocation3 + $0x98] sm:$0xff]
    %v73 = vld [vmem:[#allocation3 + $0xa0] sm:$0xff]
    %v74 = vld [vmem:[#allocation3 + $0xa8] sm:$0xff]
    %v75 = vld [vmem:[#allocation3 + $0xb0] sm:$0xff]
    %v76 = vld [vmem:[#allocation3 + $0xb8] sm:$0xff]
    %v77 = vld [vmem:[#allocation3 + $0xc0] sm:$0xff]
    %v78 = vld [vmem:[#allocation3 + $0xc8] sm:$0xff]
    %v79 = vld [vmem:[#allocation3 + $0xd0] sm:$0xff]
    %v80 = vld [vmem:[#allocation3 + $0xd8] sm:$0xff]
    %v81 = vld [vmem:[#allocation3 + $0xe0] sm:$0xff]
    %v82 = vld [vmem:[#allocation3 + $0xe8] sm:$0xff]
    %v83 = vld [vmem:[#allocation3 + $0xf0] sm:$0xff]
    %v84 = vld [vmem:[#allocation3 + $0xf8] sm:$0xff]
    %v85 = vld [vmem:[#allocation3 + $0x100] sm:$0xff]
    %v86 = vld [vmem:[#allocation3 + $0x108] sm:$0xff]
    %v87 = vld [vmem:[#allocation3 + $0x110] sm:$0xff]
    %v88 = vld [vmem:[#allocation3 + $0x118] sm:$0xff]
    %v89 = vld [vmem:[#allocation3 + $0x120] sm:$0xff]
    %v90 = vld [vmem:[#allocation3 + $0x128] sm:$0xff]
    %v91 = vld [vmem:[#allocation3 + $0x130] sm:$0xff]
    %v92 = vld [vmem:[#allocation3 + $0x138] sm:$0xff]
    %v93 = vld [vmem:[#allocation3 + $0x140] sm:$0xff]
    %v94 = vld [vmem:[#allocation3 + $0x148] sm:$0xff]
    %v95 = vld [vmem:[#allocation3 + $0x150] sm:$0xff]
    %v96 = vld [vmem:[#allocation3 + $0x158] sm:$0xff]
    %v97 = vld [vmem:[#allocation3 + $0x160] sm:$0xff]
    %v98 = vld [vmem:[#allocation3 + $0x168] sm:$0xff]
    %v99 = vld [vmem:[#allocation3 + $0x170] sm:$0xff]
    %v100 = vld [vmem:[#allocation3 + $0x178] sm:$0xff]
    %v101 = vld [vmem:[#allocation3 + $0x180] sm:$0xff]
    %v102 = vld [vmem:[#allocation3 + $0x188] sm:$0xff]
    %v103 = vld [vmem:[#allocation3 + $0x190] sm:$0xff]
    %v104 = vld [vmem:[#allocation3 + $0x198] sm:$0xff]
    %v105 = vld [vmem:[#allocation3 + $0x1a0] sm:$0xff]
    %v106 = vld [vmem:[#allocation3 + $0x1a8] sm:$0xff]
    %v107 = vld [vmem:[#allocation3 + $0x1b0] sm:$0xff]
    %v108 = vld [vmem:[#allocation3 + $0x1b8] sm:$0xff]
    %v109 = vld [vmem:[#allocation3 + $0x1c0] sm:$0xff]
    %v110 = vld [vmem:[#allocation3 + $0x1c8] sm:$0xff]
    %v111 = vld [vmem:[#allocation3 + $0x1d0] sm:$0xff]
    %v112 = vld [vmem:[#allocation3 + $0x1d8] sm:$0xff]
    %v113 = vld [vmem:[#allocation3 + $0x1e0] sm:$0xff]
    %v114 = vld [vmem:[#allocation3 + $0x1e8] sm:$0xff]
    %v115 = vld [vmem:[#allocation3 + $0x1f0] sm:$0xff]
    %v116 = vld [vmem:[#allocation3 + $0x1f8] sm:$0xff]
    %v117 = vld [vmem:[#allocation6] sm:$0xff]
    %v118 = vld [vmem:[#allocation6 + $0x8] sm:$0xff]
    %v119 = vld [vmem:[#allocation6 + $0x10] sm:$0xff]
    %v120 = vld [vmem:[#allocation6 + $0x18] sm:$0xff]
    %v121 = vld [vmem:[#allocation6 + $0x20] sm:$0xff]
    %v122 = vld [vmem:[#allocation6 + $0x28] sm:$0xff]
    %v123 = vld [vmem:[#allocation6 + $0x30] sm:$0xff]
    %v124 = vld [vmem:[#allocation6 + $0x38] sm:$0xff]
    %v125 = vld [vmem:[#allocation6 + $0x40] sm:$0xff]
    %v126 = vld [vmem:[#allocation6 + $0x48] sm:$0xff]
    %v127 = vld [vmem:[#allocation6 + $0x50] sm:$0xff]
    %v128 = vld [vmem:[#allocation6 + $0x58] sm:$0xff]
    %v129 = vld [vmem:[#allocation6 + $0x60] sm:$0xff]
    %v130 = vld [vmem:[#allocation6 + $0x68] sm:$0xff]
    %v131 = vld [vmem:[#allocation6 + $0x70] sm:$0xff]
    %v132 = vld [vmem:[#allocation6 + $0x78] sm:$0xff]
    %v133 = vld [vmem:[#allocation6 + $0x80] sm:$0xff]
    %v134 = vld [vmem:[#allocation6 + $0x88] sm:$0xff]
    %v135 = vld [vmem:[#allocation6 + $0x90] sm:$0xff]
    %v136 = vld [vmem:[#allocation6 + $0x98] sm:$0xff]
    %v137 = vld [vmem:[#allocation6 + $0xa0] sm:$0xff]
    %v138 = vld [vmem:[#allocation6 + $0xa8] sm:$0xff]
    %v139 = vld [vmem:[#allocation6 + $0xb0] sm:$0xff]
    %v140 = vld [vmem:[#allocation6 + $0xb8] sm:$0xff]
    %v141 = vld [vmem:[#allocation6 + $0xc0] sm:$0xff]
    %v142 = vld [vmem:[#allocation6 + $0xc8] sm:$0xff]
    %v143 = vld [vmem:[#allocation6 + $0xd0] sm:$0xff]
    %v144 = vld [vmem:[#allocation6 + $0xd8] sm:$0xff]
    %v145 = vld [vmem:[#allocation6 + $0xe0] sm:$0xff]
    %v146 = vld [vmem:[#allocation6 + $0xe8] sm:$0xff]
    %v147 = vld [vmem:[#allocation6 + $0xf0] sm:$0xff]
    %v148 = vld [vmem:[#allocation6 + $0xf8] sm:$0xff]
    %149 = vmatprep.subr.mxu0 %v54
    %150 = vmatpush1.msra.mxu0 %v53
    %151 = vmatprep.subr.mxu0 %v56
    %152 = vmatpush1.msra.mxu0 %v55
    %153 = vmatprep.subr.mxu0 %v58
    %154 = vmatpush1.msra.mxu0 %v57
    %155 = vmatprep.subr.mxu0 %v60
    %156 = vmatpush1.msra.mxu0 %v59
    %157 = vmatprep.subr.mxu0 %v62
    %158 = vmatpush1.msra.mxu0 %v61
    %159 = vmatprep.subr.mxu0 %v64
    %160 = vmatpush1.msra.mxu0 %v63
    %161 = vmatprep.subr.mxu0 %v66
    %162 = vmatpush1.msra.mxu0 %v65
    %163 = vmatprep.subr.mxu0 %v68
    %164 = vmatpush1.msra.mxu0 %v67
    %165 = vmatprep.subr.mxu0 %v70
    %166 = vmatpush1.msra.mxu0 %v69
    %167 = vmatprep.subr.mxu0 %v72
    %168 = vmatpush1.msra.mxu0 %v71
    %169 = vmatprep.subr.mxu0 %v74
    %170 = vmatpush1.msra.mxu0 %v73
    %171 = vmatprep.subr.mxu0 %v76
    %172 = vmatpush1.msra.mxu0 %v75
    %173 = vmatprep.subr.mxu0 %v78
    %174 = vmatpush1.msra.mxu0 %v77
    %175 = vmatprep.subr.mxu0 %v80
    %176 = vmatpush1.msra.mxu0 %v79
    %177 = vmatprep.subr.mxu0 %v82
    %178 = vmatpush1.msra.mxu0 %v81
    %179 = vmatprep.subr.mxu0 %v84
    %180 = vmatpush1.msra.mxu0 %v83
    %181 = vmatprep.subr.mxu0 %v86
    %182 = vmatpush1.msra.mxu0 %v85
    %183 = vmatprep.subr.mxu0 %v88
    %184 = vmatpush1.msra.mxu0 %v87
    %185 = vmatprep.subr.mxu0 %v90
    %186 = vmatpush1.msra.mxu0 %v89
    %187 = vmatprep.subr.mxu0 %v92
    %188 = vmatpush1.msra.mxu0 %v91
    %189 = vmatprep.subr.mxu0 %v94
    %190 = vmatpush1.msra.mxu0 %v93
    %191 = vmatprep.subr.mxu0 %v96
    %192 = vmatpush1.msra.mxu0 %v95
    %193 = vmatprep.subr.mxu0 %v98
    %194 = vmatpush1.msra.mxu0 %v97
    %195 = vmatprep.subr.mxu0 %v100
    %196 = vmatpush1.msra.mxu0 %v99
    %197 = vmatprep.subr.mxu0 %v102
    %198 = vmatpush1.msra.mxu0 %v101
    %199 = vmatprep.subr.mxu0 %v104
    %200 = vmatpush1.msra.mxu0 %v103
    %201 = vmatprep.subr.mxu0 %v106
    %202 = vmatpush1.msra.mxu0 %v105
    %203 = vmatprep.subr.mxu0 %v108
    %204 = vmatpush1.msra.mxu0 %v107
    %205 = vmatprep.subr.mxu0 %v110
    %206 = vmatpush1.msra.mxu0 %v109
    %207 = vmatprep.subr.mxu0 %v112
    %208 = vmatpush1.msra.mxu0 %v111
    %209 = vmatprep.subr.mxu0 %v114
    %210 = vmatpush1.msra.mxu0 %v113
    %211 = vmatprep.subr.mxu0 %v116
    %212 = vmatpush1.msra.mxu0 %v115
    %213 = vmatprep.mubr.f32.mxu0 %v118
    %214 = vmatmul.mubr.f32.gmra.mrb[0].mxu0 %v117
    %v215 = vpop.f32.mrb[0].mxu0
    %v216 = vadd.f32 0.0, %v215
    %v217 = vpop.f32.mrb[0].mxu0
    %v218 = vadd.f32 0.0, %v217
    %219 = vmatprep.mubr.f32.mxu0 %v120
    %220 = vmatmul.mubr.f32.gmra.mrb[0].mxu0 %v119
    %v221 = vpop.f32.mrb[0].mxu0
    %v222 = vadd.f32 0.0, %v221
    %v223 = vpop.f32.mrb[0].mxu0
    %v224 = vadd.f32 0.0, %v223
    %225 = vmatprep.mubr.f32.mxu0 %v122
    %226 = vmatmul.mubr.f32.gmra.mrb[0].mxu0 %v121
    %v227 = vpop.f32.mrb[0].mxu0
    %v228 = vadd.f32 0.0, %v227
    %v229 = vpop.f32.mrb[0].mxu0
    %v230 = vadd.f32 0.0, %v229
    %231 = vmatprep.mubr.f32.mxu0 %v124
    %232 = vmatmul.mubr.f32.gmra.mrb[0].mxu0 %v123
    %v233 = vpop.f32.mrb[0].mxu0
    %v234 = vadd.f32 0.0, %v233
    %v235 = vpop.f32.mrb[0].mxu0
    %v236 = vadd.f32 0.0, %v235
    %237 = vmatprep.mubr.f32.mxu0 %v126
    %238 = vmatmul.mubr.f32.gmra.mrb[0].mxu0 %v125
    %v239 = vpop.f32.mrb[0].mxu0
    %v240 = vadd.f32 0.0, %v239
    %v241 = vpop.f32.mrb[0].mxu0
    %v242 = vadd.f32 0.0, %v241
    %243 = vmatprep.mubr.f32.mxu0 %v128
    %244 = vmatmul.mubr.f32.gmra.mrb[0].mxu0 %v127
    %v245 = vpop.f32.mrb[0].mxu0
    %v246 = vadd.f32 0.0, %v245
    %v247 = vpop.f32.mrb[0].mxu0
    %v248 = vadd.f32 0.0, %v247
    %249 = vmatprep.mubr.f32.mxu0 %v130
    %250 = vmatmul.mubr.f32.gmra.mrb[0].mxu0 %v129
    %v251 = vpop.f32.mrb[0].mxu0
    %v252 = vadd.f32 0.0, %v251
    %v253 = vpop.f32.mrb[0].mxu0
    %v254 = vadd.f32 0.0, %v253
    %255 = vmatprep.mubr.f32.mxu0 %v132
    %256 = vmatmul.mubr.f32.gmra.mrb[0].mxu0 %v131
    %v257 = vpop.f32.mrb[0].mxu0
    %v258 = vadd.f32 0.0, %v257
    %v259 = vpop.f32.mrb[0].mxu0
    %v260 = vadd.f32 0.0, %v259
    %261 = vmatprep.mubr.f32.mxu0 %v134
    %262 = vmatmul.mubr.f32.gmra.mrb[0].mxu0 %v133
    %v263 = vpop.f32.mrb[0].mxu0
    %v264 = vadd.f32 0.0, %v263
    %v265 = vpop.f32.mrb[0].mxu0
    %v266 = vadd.f32 0.0, %v265
    %267 = vmatprep.mubr.f32.mxu0 %v136
    %268 = vmatmul.mubr.f32.gmra.mrb[0].mxu0 %v135
    %v269 = vpop.f32.mrb[0].mxu0
    %v270 = vadd.f32 0.0, %v269
    %v271 = vpop.f32.mrb[0].mxu0
    %v272 = vadd.f32 0.0, %v271
    %273 = vmatprep.mubr.f32.mxu0 %v138
    %274 = vmatmul.mubr.f32.gmra.mrb[0].mxu0 %v137
    %v275 = vpop.f32.mrb[0].mxu0
    %v276 = vadd.f32 0.0, %v275
    %v277 = vpop.f32.mrb[0].mxu0
    %v278 = vadd.f32 0.0, %v277
    %279 = vmatprep.mubr.f32.mxu0 %v140
    %280 = vmatmul.mubr.f32.gmra.mrb[0].mxu0 %v139
    %v281 = vpop.f32.mrb[0].mxu0
    %v282 = vadd.f32 0.0, %v281
    %v283 = vpop.f32.mrb[0].mxu0
    %v284 = vadd.f32 0.0, %v283
    %285 = vmatprep.mubr.f32.mxu0 %v142
    %286 = vmatmul.mubr.f32.gmra.mrb[0].mxu0 %v141
    %v287 = vpop.f32.mrb[0].mxu0
    %v288 = vadd.f32 0.0, %v287
    %v289 = vpop.f32.mrb[0].mxu0
    %v290 = vadd.f32 0.0, %v289
    %291 = vmatprep.mubr.f32.mxu0 %v144
    %292 = vmatmul.mubr.f32.gmra.mrb[0].mxu0 %v143
    %v293 = vpop.f32.mrb[0].mxu0
    %v294 = vadd.f32 0.0, %v293
    %v295 = vpop.f32.mrb[0].mxu0
    %v296 = vadd.f32 0.0, %v295
    %297 = vmatprep.mubr.f32.mxu0 %v146
    %298 = vmatmul.mubr.f32.gmra.mrb[0].mxu0 %v145
    %v299 = vpop.f32.mrb[0].mxu0
    %v300 = vadd.f32 0.0, %v299
    %v301 = vpop.f32.mrb[0].mxu0
    %v302 = vadd.f32 0.0, %v301
    %303 = vmatprep.mubr.f32.mxu0 %v148
    %304 = vmatmul.mubr.f32.gmra.mrb[0].mxu0 %v147
    %v305 = vpop.f32.mrb[0].mxu0
    %v306 = vadd.f32 0.0, %v305
    %v307 = vpop.f32.mrb[0].mxu0
    %v308 = vadd.f32 0.0, %v307
    %309 = vdwg.mxu0
    %v310 = vld [vmem:[%s2] sm:$0xff]
    %v311 = vld [vmem:[%s2 + $0x8] sm:$0xff]
    %v312 = vld [vmem:[%s2 + $0x10] sm:$0xff]
    %v313 = vld [vmem:[%s2 + $0x18] sm:$0xff]
    %v314 = vld [vmem:[%s2 + $0x20] sm:$0xff]
    %v315 = vld [vmem:[%s2 + $0x28] sm:$0xff]
    %v316 = vld [vmem:[%s2 + $0x30] sm:$0xff]
    %v317 = vld [vmem:[%s2 + $0x38] sm:$0xff]
    %319 = vset.pattern.permute.xlu0 0
    %320 = vperm.xlu0 %319, %v310
    %v321 = vpop.permute.xlu0 %320
    %324 = vset.pattern.permute.xlu0 0
    %325 = vperm.xlu0 %324, %v311
    %v326 = vpop.permute.xlu0 %325
    %329 = vset.pattern.permute.xlu0 0
    %330 = vperm.xlu0 %329, %v312
    %v331 = vpop.permute.xlu0 %330
    %334 = vset.pattern.permute.xlu0 0
    %335 = vperm.xlu0 %334, %v313
    %v336 = vpop.permute.xlu0 %335
    %339 = vset.pattern.permute.xlu0 0
    %340 = vperm.xlu0 %339, %v314
    %v341 = vpop.permute.xlu0 %340
    %344 = vset.pattern.permute.xlu0 0
    %345 = vperm.xlu0 %344, %v315
    %v346 = vpop.permute.xlu0 %345
    %349 = vset.pattern.permute.xlu0 0
    %350 = vperm.xlu0 %349, %v316
    %v351 = vpop.permute.xlu0 %350
    %354 = vset.pattern.permute.xlu0 0
    %355 = vperm.xlu0 %354, %v317
    %v356 = vpop.permute.xlu0 %355
    %v358 = vadd.f32 %v216, %v321
    %v359 = vadd.f32 %v218, %v321
    %v360 = vadd.f32 %v222, %v326
    %v361 = vadd.f32 %v224, %v326
    %v362 = vadd.f32 %v228, %v331
    %v363 = vadd.f32 %v230, %v331
    %v364 = vadd.f32 %v234, %v336
    %v365 = vadd.f32 %v236, %v336
    %v366 = vadd.f32 %v240, %v341
    %v367 = vadd.f32 %v242, %v341
    %v368 = vadd.f32 %v246, %v346
    %v369 = vadd.f32 %v248, %v346
    %v370 = vadd.f32 %v252, %v351
    %v371 = vadd.f32 %v254, %v351
    %v372 = vadd.f32 %v258, %v356
    %v373 = vadd.f32 %v260, %v356
    %v374 = vmax.f32 %v358, 0.0
    %v375 = vmax.f32 %v359, 0.0
    %v376 = vmax.f32 %v360, 0.0
    %v377 = vmax.f32 %v361, 0.0
    %v378 = vmax.f32 %v362, 0.0
    %v379 = vmax.f32 %v363, 0.0
    %v380 = vmax.f32 %v364, 0.0
    %v381 = vmax.f32 %v365, 0.0
    %v382 = vmax.f32 %v366, 0.0
    %v383 = vmax.f32 %v367, 0.0
    %v384 = vmax.f32 %v368, 0.0
    %v385 = vmax.f32 %v369, 0.0
    %v386 = vmax.f32 %v370, 0.0
    %v387 = vmax.f32 %v371, 0.0
    %v388 = vmax.f32 %v372, 0.0
    %v389 = vmax.f32 %v373, 0.0
    %v390 = vld [vmem:[%s3] sm:$0xff]
    %v391 = vld [vmem:[%s3 + $0x8] sm:$0xff]
    %v392 = vld [vmem:[%s3 + $0x10] sm:$0xff]
    %v393 = vld [vmem:[%s3 + $0x18] sm:$0xff]
    %v394 = vld [vmem:[%s3 + $0x20] sm:$0xff]
    %v395 = vld [vmem:[%s3 + $0x28] sm:$0xff]
    %v396 = vld [vmem:[%s3 + $0x30] sm:$0xff]
    %v397 = vld [vmem:[%s3 + $0x38] sm:$0xff]
    %v398 = vld [vmem:[%s4] sm:$0xff]
    %v399 = vld [vmem:[%s4 + $0x8] sm:$0xff]
    %v400 = vld [vmem:[%s4 + $0x10] sm:$0xff]
    %v401 = vld [vmem:[%s4 + $0x18] sm:$0xff]
    %v402 = vld [vmem:[%s4 + $0x20] sm:$0xff]
    %v403 = vld [vmem:[%s4 + $0x28] sm:$0xff]
    %v404 = vld [vmem:[%s4 + $0x30] sm:$0xff]
    %v405 = vld [vmem:[%s4 + $0x38] sm:$0xff]
    %407 = vset.pattern.permute.xlu0 0
    %408 = vperm.xlu0 %407, %v398
    %v409 = vpop.permute.xlu0 %408
    %412 = vset.pattern.permute.xlu0 0
    %413 = vperm.xlu0 %412, %v399
    %v414 = vpop.permute.xlu0 %413
    %417 = vset.pattern.permute.xlu0 0
    %418 = vperm.xlu0 %417, %v400
    %v419 = vpop.permute.xlu0 %418
    %422 = vset.pattern.permute.xlu0 0
    %423 = vperm.xlu0 %422, %v401
    %v424 = vpop.permute.xlu0 %423
    %427 = vset.pattern.permute.xlu0 0
    %428 = vperm.xlu0 %427, %v402
    %v429 = vpop.permute.xlu0 %428
    %432 = vset.pattern.permute.xlu0 0
    %433 = vperm.xlu0 %432, %v403
    %v434 = vpop.permute.xlu0 %433
    %437 = vset.pattern.permute.xlu0 0
    %438 = vperm.xlu0 %437, %v404
    %v439 = vpop.permute.xlu0 %438
    %442 = vset.pattern.permute.xlu0 0
    %443 = vperm.xlu0 %442, %v405
    %v444 = vpop.permute.xlu0 %443
    %vm446 = vcmask 523264
    %v448 = vsel %vm446, %v390, 0
    %v451 = vsel %vm446, %v391, 0
    %v454 = vsel %vm446, %v392, 0
    %v457 = vsel %vm446, %v393, 0
    %v460 = vsel %vm446, %v394, 0
    %v463 = vsel %vm446, %v395, 0
    %v466 = vsel %vm446, %v396, 0
    %v469 = vsel %vm446, %v397, 0
    %471 = vmatprep.subr.mxu0 %v375
    %472 = vmatpush1.msra.mxu0 %v374
    %473 = vmatprep.subr.mxu0 %v377
    %474 = vmatpush1.msra.mxu0 %v376
    %475 = vmatprep.subr.mxu0 %v379
    %476 = vmatpush1.msra.mxu0 %v378
    %477 = vmatprep.subr.mxu0 %v381
    %478 = vmatpush1.msra.mxu0 %v380
    %479 = vmatprep.subr.mxu0 %v383
    %480 = vmatpush1.msra.mxu0 %v382
    %481 = vmatprep.subr.mxu0 %v385
    %482 = vmatpush1.msra.mxu0 %v384
    %483 = vmatprep.subr.mxu0 %v387
    %484 = vmatpush1.msra.mxu0 %v386
    %485 = vmatprep.subr.mxu0 %v389
    %486 = vmatpush1.msra.mxu0 %v388
    %487 = vmatprep.subr.mxu0 0.0
    %488 = vmatpush1.msra.mxu0 0.0
    %489 = vmatprep.subr.mxu0 0.0
    %490 = vmatpush1.msra.mxu0 0.0
    %491 = vmatprep.subr.mxu0 0.0
    %492 = vmatpush1.msra.mxu0 0.0
    %493 = vmatprep.subr.mxu0 0.0
    %494 = vmatpush1.msra.mxu0 0.0
    %495 = vmatprep.subr.mxu0 0.0
    %496 = vmatpush1.msra.mxu0 0.0
    %497 = vmatprep.subr.mxu0 0.0
    %498 = vmatpush1.msra.mxu0 0.0
    %499 = vmatprep.subr.mxu0 0.0
    %500 = vmatpush1.msra.mxu0 0.0
    %501 = vmatprep.subr.mxu0 0.0
    %502 = vmatpush1.msra.mxu0 0.0
    %503 = vmatprep.subr.mxu0 0.0
    %504 = vmatpush1.msra.mxu0 0.0
    %505 = vmatprep.subr.mxu0 0.0
    %506 = vmatpush1.msra.mxu0 0.0
    %507 = vmatprep.subr.mxu0 0.0
    %508 = vmatpush1.msra.mxu0 0.0
    %509 = vmatprep.subr.mxu0 0.0
    %510 = vmatpush1.msra.mxu0 0.0
    %511 = vmatprep.subr.mxu0 0.0
    %512 = vmatpush1.msra.mxu0 0.0
    %513 = vmatprep.subr.mxu0 0.0
    %514 = vmatpush1.msra.mxu0 0.0
    %515 = vmatprep.subr.mxu0 0.0
    %516 = vmatpush1.msra.mxu0 0.0
    %517 = vmatprep.subr.mxu0 0.0
    %518 = vmatpush1.msra.mxu0 0.0
    %519 = vmatprep.subr.mxu0 0.0
    %520 = vmatpush1.msra.mxu0 0.0
    %521 = vmatprep.subr.mxu0 0.0
    %522 = vmatpush1.msra.mxu0 0.0
    %523 = vmatprep.subr.mxu0 0.0
    %524 = vmatpush1.msra.mxu0 0.0
    %525 = vmatprep.subr.mxu0 0.0
    %526 = vmatpush1.msra.mxu0 0.0
    %527 = vmatprep.subr.mxu0 0.0
    %528 = vmatpush1.msra.mxu0 0.0
    %529 = vmatprep.subr.mxu0 0.0
    %530 = vmatpush1.msra.mxu0 0.0
    %531 = vmatprep.subr.mxu0 0.0
    %532 = vmatpush1.msra.mxu0 0.0
    %533 = vmatprep.subr.mxu0 0.0
    %534 = vmatpush1.msra.mxu0 0.0
    %535 = vmatprep.mubr.f32.mxu0 0.0
    %536 = vmatmul.mubr.f32.gmra.mrb[0].mxu0 %v448
    %v537 = vpop.f32.mrb[0].mxu0
    %v538 = vadd.f32 %v409, %v537
    %v539 = vpop.f32.mrb[0].mxu0
    %v540 = vadd.f32 %v409, %v539
    %541 = vmatprep.mubr.f32.mxu0 0.0
    %542 = vmatmul.mubr.f32.gmra.mrb[0].mxu0 %v451
    %v543 = vpop.f32.mrb[0].mxu0
    %v544 = vadd.f32 %v414, %v543
    %v545 = vpop.f32.mrb[0].mxu0
    %v546 = vadd.f32 %v414, %v545
    %547 = vmatprep.mubr.f32.mxu0 0.0
    %548 = vmatmul.mubr.f32.gmra.mrb[0].mxu0 %v454
    %v549 = vpop.f32.mrb[0].mxu0
    %v550 = vadd.f32 %v419, %v549
    %v551 = vpop.f32.mrb[0].mxu0
    %v552 = vadd.f32 %v419, %v551
    %553 = vmatprep.mubr.f32.mxu0 0.0
    %554 = vmatmul.mubr.f32.gmra.mrb[0].mxu0 %v457
    %v555 = vpop.f32.mrb[0].mxu0
    %v556 = vadd.f32 %v424, %v555
    %v557 = vpop.f32.mrb[0].mxu0
    %v558 = vadd.f32 %v424, %v557
    %559 = vmatprep.mubr.f32.mxu0 0.0
    %560 = vmatmul.mubr.f32.gmra.mrb[0].mxu0 %v460
    %v561 = vpop.f32.mrb[0].mxu0
    %v562 = vadd.f32 %v429, %v561
    %v563 = vpop.f32.mrb[0].mxu0
    %v564 = vadd.f32 %v429, %v563
    %565 = vmatprep.mubr.f32.mxu0 0.0
    %566 = vmatmul.mubr.f32.gmra.mrb[0].mxu0 %v463
    %v567 = vpop.f32.mrb[0].mxu0
    %v568 = vadd.f32 %v434, %v567
    %v569 = vpop.f32.mrb[0].mxu0
    %v570 = vadd.f32 %v434, %v569
    %571 = vmatprep.mubr.f32.mxu0 0.0
    %572 = vmatmul.mubr.f32.gmra.mrb[0].mxu0 %v466
    %v573 = vpop.f32.mrb[0].mxu0
    %v574 = vadd.f32 %v439, %v573
    %v575 = vpop.f32.mrb[0].mxu0
    %v576 = vadd.f32 %v439, %v575
    %577 = vmatprep.mubr.f32.mxu0 0.0
    %578 = vmatmul.mubr.f32.gmra.mrb[0].mxu0 %v469
    %v579 = vpop.f32.mrb[0].mxu0
    %v580 = vadd.f32 %v444, %v579
    %v581 = vpop.f32.mrb[0].mxu0
    %v582 = vadd.f32 %v444, %v581
    %583 = vdwg.mxu0
    %v584 = vxor.u32 %v538, 2147483648
    %v585 = vxor.u32 %v540, 2147483648
    %v586 = vxor.u32 %v544, 2147483648
    %v587 = vxor.u32 %v546, 2147483648
    %v588 = vxor.u32 %v550, 2147483648
    %v589 = vxor.u32 %v552, 2147483648
    %v590 = vxor.u32 %v556, 2147483648
    %v591 = vxor.u32 %v558, 2147483648
    %v592 = vxor.u32 %v562, 2147483648
    %v593 = vxor.u32 %v564, 2147483648
    %v594 = vxor.u32 %v568, 2147483648
    %v595 = vxor.u32 %v570, 2147483648
    %v596 = vxor.u32 %v574, 2147483648
    %v597 = vxor.u32 %v576, 2147483648
    %v598 = vxor.u32 %v580, 2147483648
    %v599 = vxor.u32 %v582, 2147483648
    %v600 = vmul.f32 %v584, 1.442695
    %v601 = vpow.pop %v600
    %v602 = vmul.f32 %v585, 1.442695
    %v603 = vpow.pop %v602
    %v604 = vmul.f32 %v586, 1.442695
    %v605 = vpow.pop %v604
    %v606 = vmul.f32 %v587, 1.442695
    %v607 = vpow.pop %v606
    %v608 = vmul.f32 %v588, 1.442695
    %v609 = vpow.pop %v608
    %v610 = vmul.f32 %v589, 1.442695
    %v611 = vpow.pop %v610
    %v612 = vmul.f32 %v590, 1.442695
    %v613 = vpow.pop %v612
    %v614 = vmul.f32 %v591, 1.442695
    %v615 = vpow.pop %v614
    %v616 = vmul.f32 %v592, 1.442695
    %v617 = vpow.pop %v616
    %v618 = vmul.f32 %v593, 1.442695
    %v619 = vpow.pop %v618
    %v620 = vmul.f32 %v594, 1.442695
    %v621 = vpow.pop %v620
    %v622 = vmul.f32 %v595, 1.442695
    %v623 = vpow.pop %v622
    %v624 = vmul.f32 %v596, 1.442695
    %v625 = vpow.pop %v624
    %v626 = vmul.f32 %v597, 1.442695
    %v627 = vpow.pop %v626
    %v628 = vmul.f32 %v598, 1.442695
    %v629 = vpow.pop %v628
    %v630 = vmul.f32 %v599, 1.442695
    %v631 = vpow.pop %v630
    %v632 = vadd.f32 %v601, 1.0
    %v633 = vadd.f32 %v603, 1.0
    %v634 = vadd.f32 %v605, 1.0
    %v635 = vadd.f32 %v607, 1.0
    %v636 = vadd.f32 %v609, 1.0
    %v637 = vadd.f32 %v611, 1.0
    %v638 = vadd.f32 %v613, 1.0
    %v639 = vadd.f32 %v615, 1.0
    %v640 = vadd.f32 %v617, 1.0
    %v641 = vadd.f32 %v619, 1.0
    %v642 = vadd.f32 %v621, 1.0
    %v643 = vadd.f32 %v623, 1.0
    %v644 = vadd.f32 %v625, 1.0
    %v645 = vadd.f32 %v627, 1.0
    %v646 = vadd.f32 %v629, 1.0
    %v647 = vadd.f32 %v631, 1.0
    %v648 = vrcp.pop %v632
    %v649 = vmul.f32 1.0, %v648
    %v650 = vrcp.pop %v633
    %v651 = vmul.f32 1.0, %v650
    %v652 = vrcp.pop %v634
    %v653 = vmul.f32 1.0, %v652
    %v654 = vrcp.pop %v635
    %v655 = vmul.f32 1.0, %v654
    %v656 = vrcp.pop %v636
    %v657 = vmul.f32 1.0, %v656
    %v658 = vrcp.pop %v637
    %v659 = vmul.f32 1.0, %v658
    %v660 = vrcp.pop %v638
    %v661 = vmul.f32 1.0, %v660
    %v662 = vrcp.pop %v639
    %v663 = vmul.f32 1.0, %v662
    %v664 = vrcp.pop %v640
    %v665 = vmul.f32 1.0, %v664
    %v666 = vrcp.pop %v641
    %v667 = vmul.f32 1.0, %v666
    %v668 = vrcp.pop %v642
    %v669 = vmul.f32 1.0, %v668
    %v670 = vrcp.pop %v643
    %v671 = vmul.f32 1.0, %v670
    %v672 = vrcp.pop %v644
    %v673 = vmul.f32 1.0, %v672
    %v674 = vrcp.pop %v645
    %v675 = vmul.f32 1.0, %v674
    %v676 = vrcp.pop %v646
    %v677 = vmul.f32 1.0, %v676
    %v678 = vrcp.pop %v647
    %v679 = vmul.f32 1.0, %v678
    %s680 = sld [smem:[#allocation2]]
    %v681 = vstv %s680
    %v682 = vmul.f32 %v681, %v649
    %v683 = vmul.f32 %v681, %v651
    %v684 = vmul.f32 %v681, %v653
    %v685 = vmul.f32 %v681, %v655
    %v686 = vmul.f32 %v681, %v657
    %v687 = vmul.f32 %v681, %v659
    %v688 = vmul.f32 %v681, %v661
    %v689 = vmul.f32 %v681, %v663
    %v690 = vmul.f32 %v681, %v665
    %v691 = vmul.f32 %v681, %v667
    %v692 = vmul.f32 %v681, %v669
    %v693 = vmul.f32 %v681, %v671
    %v694 = vmul.f32 %v681, %v673
    %v695 = vmul.f32 %v681, %v675
    %v696 = vmul.f32 %v681, %v677
    %v697 = vmul.f32 %v681, %v679
    %s698 = ssub.f32 1.0, %s680
    %v699 = vstv %s698
    %v700 = vmul.f32 %v699, %v264
    %v701 = vmul.f32 %v699, %v266
    %v702 = vmul.f32 %v699, %v270
    %v703 = vmul.f32 %v699, %v272
    %v704 = vmul.f32 %v699, %v276
    %v705 = vmul.f32 %v699, %v278
    %v706 = vmul.f32 %v699, %v282
    %v707 = vmul.f32 %v699, %v284
    %v708 = vmul.f32 %v699, %v288
    %v709 = vmul.f32 %v699, %v290
    %v710 = vmul.f32 %v699, %v294
    %v711 = vmul.f32 %v699, %v296
    %v712 = vmul.f32 %v699, %v300
    %v713 = vmul.f32 %v699, %v302
    %v714 = vmul.f32 %v699, %v306
    %v715 = vmul.f32 %v699, %v308
    %v716 = vadd.f32 %v682, %v700
    %v717 = vadd.f32 %v683, %v701
    %v718 = vadd.f32 %v684, %v702
    %v719 = vadd.f32 %v685, %v703
    %v720 = vadd.f32 %v686, %v704
    %v721 = vadd.f32 %v687, %v705
    %v722 = vadd.f32 %v688, %v706
    %v723 = vadd.f32 %v689, %v707
    %v724 = vadd.f32 %v690, %v708
    %v725 = vadd.f32 %v691, %v709
    %v726 = vadd.f32 %v692, %v710
    %v727 = vadd.f32 %v693, %v711
    %v728 = vadd.f32 %v694, %v712
    %v729 = vadd.f32 %v695, %v713
    %v730 = vadd.f32 %v696, %v714
    %v731 = vadd.f32 %v697, %v715
    %v732 = vmul.f32 %v716, 4.0
    %v733 = vmul.f32 %v717, 4.0
    %v734 = vmul.f32 %v718, 4.0
    %v735 = vmul.f32 %v719, 4.0
    %v736 = vmul.f32 %v720, 4.0
    %v737 = vmul.f32 %v721, 4.0
    %v738 = vmul.f32 %v722, 4.0
    %v739 = vmul.f32 %v723, 4.0
    %v740 = vmul.f32 %v724, 4.0
    %v741 = vmul.f32 %v725, 4.0
    %v742 = vmul.f32 %v726, 4.0
    %v743 = vmul.f32 %v727, 4.0
    %v744 = vmul.f32 %v728, 4.0
    %v745 = vmul.f32 %v729, 4.0
    %v746 = vmul.f32 %v730, 4.0
    %v747 = vmul.f32 %v731, 4.0
    %v748 = vadd.f32 %v732, 1e-06
    %v749 = vadd.f32 %v733, 1e-06
    %v750 = vadd.f32 %v734, 1e-06
    %v751 = vadd.f32 %v735, 1e-06
    %v752 = vadd.f32 %v736, 1e-06
    %v753 = vadd.f32 %v737, 1e-06
    %v754 = vadd.f32 %v738, 1e-06
    %v755 = vadd.f32 %v739, 1e-06
    %v756 = vadd.f32 %v740, 1e-06
    %v757 = vadd.f32 %v741, 1e-06
    %v758 = vadd.f32 %v742, 1e-06
    %v759 = vadd.f32 %v743, 1e-06
    %v760 = vadd.f32 %v744, 1e-06
    %v761 = vadd.f32 %v745, 1e-06
    %v762 = vadd.f32 %v746, 1e-06
    %v763 = vadd.f32 %v747, 1e-06
    %v764 = vrcp.pop %v748
    %v765 = vrcp.pop %v749
    %v766 = vrcp.pop %v750
    %v767 = vrcp.pop %v751
    %v768 = vrcp.pop %v752
    %v769 = vrcp.pop %v753
    %v770 = vrcp.pop %v754
    %v771 = vrcp.pop %v755
    %v772 = vrcp.pop %v756
    %v773 = vrcp.pop %v757
    %v774 = vrcp.pop %v758
    %v775 = vrcp.pop %v759
    %v776 = vrcp.pop %v760
    %v777 = vrcp.pop %v761
    %v778 = vrcp.pop %v762
    %v779 = vrcp.pop %v763
    %v780 = vmul.f32 %v764, 0.012345679
    %v781 = vmul.f32 %v765, 0.012345679
    %v782 = vmul.f32 %v766, 0.012345679
    %v783 = vmul.f32 %v767, 0.012345679
    %v784 = vmul.f32 %v768, 0.012345679
    %v785 = vmul.f32 %v769, 0.012345679
    %v786 = vmul.f32 %v770, 0.012345679
    %v787 = vmul.f32 %v771, 0.012345679
    %v788 = vmul.f32 %v772, 0.012345679
    %v789 = vmul.f32 %v773, 0.012345679
    %v790 = vmul.f32 %v774, 0.012345679
    %v791 = vmul.f32 %v775, 0.012345679
    %v792 = vmul.f32 %v776, 0.012345679
    %v793 = vmul.f32 %v777, 0.012345679
    %v794 = vmul.f32 %v778, 0.012345679
    %v795 = vmul.f32 %v779, 0.012345679
    %v796 = vmul.f32 %v716, %v764
    %v797 = vmul.f32 %v717, %v765
    %v798 = vmul.f32 %v718, %v766
    %v799 = vmul.f32 %v719, %v767
    %v800 = vmul.f32 %v720, %v768
    %v801 = vmul.f32 %v721, %v769
    %v802 = vmul.f32 %v722, %v770
    %v803 = vmul.f32 %v723, %v771
    %v804 = vmul.f32 %v724, %v772
    %v805 = vmul.f32 %v725, %v773
    %v806 = vmul.f32 %v726, %v774
    %v807 = vmul.f32 %v727, %v775
    %v808 = vmul.f32 %v728, %v776
    %v809 = vmul.f32 %v729, %v777
    %v810 = vmul.f32 %v730, %v778
    %v811 = vmul.f32 %v731, %v779
    %v812 = vlaneseq
    %v813 = vshrl.u32 %v812, 7
    %v814 = vadd.s32 %v813, 8
    %v815 = vadd.s32 %v813, 16
    %v816 = vadd.s32 %v813, 24
    %v817 = vadd.s32 %v813, 32
    %v818 = vadd.s32 %v813, 40
    %v819 = vadd.s32 %v813, 48
    %v820 = vadd.s32 %v813, 56
    %vm821 = vcmp.lt.s32.totalorder %v813, 0
    %v822 = vsub.s32 0, %v813
    %v823 = vsel %vm821, %v822, %v813
    %v824 = vshrl.u32 %v823, 3
    %v825 = vand.u32 %v823, 7
    %v826 = vsub.s32 0, %v825
    %v827 = vsel %vm821, %v826, %v825
    %vm828 = vcmp.lt.s32.totalorder %v814, 0
    %v829 = vsub.s32 0, %v814
    %v830 = vsel %vm828, %v829, %v814
    %v831 = vshrl.u32 %v830, 3
    %v832 = vand.u32 %v830, 7
    %v833 = vsub.s32 0, %v832
    %v834 = vsel %vm828, %v833, %v832
    %vm835 = vcmp.lt.s32.totalorder %v815, 0
    %v836 = vsub.s32 0, %v815
    %v837 = vsel %vm835, %v836, %v815
    %v838 = vshrl.u32 %v837, 3
    %v839 = vand.u32 %v837, 7
    %v840 = vsub.s32 0, %v839
    %v841 = vsel %vm835, %v840, %v839
    %vm842 = vcmp.lt.s32.totalorder %v816, 0
    %v843 = vsub.s32 0, %v816
    %v844 = vsel %vm842, %v843, %v816
    %v845 = vshrl.u32 %v844, 3
    %v846 = vand.u32 %v844, 7
    %v847 = vsub.s32 0, %v846
    %v848 = vsel %vm842, %v847, %v846
    %vm849 = vcmp.lt.s32.totalorder %v817, 0
    %v850 = vsub.s32 0, %v817
    %v851 = vsel %vm849, %v850, %v817
    %v852 = vshrl.u32 %v851, 3
    %v853 = vand.u32 %v851, 7
    %v854 = vsub.s32 0, %v853
    %v855 = vsel %vm849, %v854, %v853
    %vm856 = vcmp.lt.s32.totalorder %v818, 0
    %v857 = vsub.s32 0, %v818
    %v858 = vsel %vm856, %v857, %v818
    %v859 = vshrl.u32 %v858, 3
    %v860 = vand.u32 %v858, 7
    %v861 = vsub.s32 0, %v860
    %v862 = vsel %vm856, %v861, %v860
    %vm863 = vcmp.lt.s32.totalorder %v819, 0
    %v864 = vsub.s32 0, %v819
    %v865 = vsel %vm863, %v864, %v819
    %v866 = vshrl.u32 %v865, 3
    %v867 = vand.u32 %v865, 7
    %v868 = vsub.s32 0, %v867
    %v869 = vsel %vm863, %v868, %v867
    %vm870 = vcmp.lt.s32.totalorder %v820, 0
    %v871 = vsub.s32 0, %v820
    %v872 = vsel %vm870, %v871, %v820
    %v873 = vshrl.u32 %v872, 3
    %v874 = vand.u32 %v872, 7
    %v875 = vsub.s32 0, %v874
    %v876 = vsel %vm870, %v875, %v874
    %vm877 = vcmp.ne.s32.totalorder %v827, 0
    %vm878 = vcmp.ne.s32.totalorder %v834, 0
    %vm879 = vcmp.ne.s32.totalorder %v841, 0
    %vm880 = vcmp.ne.s32.totalorder %v848, 0
    %vm881 = vcmp.ne.s32.totalorder %v855, 0
    %vm882 = vcmp.ne.s32.totalorder %v862, 0
    %vm883 = vcmp.ne.s32.totalorder %v869, 0
    %vm884 = vcmp.ne.s32.totalorder %v876, 0
    %vm885 = vcmp.lt.s32.totalorder %v827, 0
    %vm886 = vcmp.lt.s32.totalorder %v834, 0
    %vm887 = vcmp.lt.s32.totalorder %v841, 0
    %vm888 = vcmp.lt.s32.totalorder %v848, 0
    %vm889 = vcmp.lt.s32.totalorder %v855, 0
    %vm890 = vcmp.lt.s32.totalorder %v862, 0
    %vm891 = vcmp.lt.s32.totalorder %v869, 0
    %vm892 = vcmp.lt.s32.totalorder %v876, 0
    %vm893 = vmand %vm885, %vm877
    %vm894 = vmand %vm886, %vm878
    %vm895 = vmand %vm887, %vm879
    %vm896 = vmand %vm888, %vm880
    %vm897 = vmand %vm889, %vm881
    %vm898 = vmand %vm890, %vm882
    %vm899 = vmand %vm891, %vm883
    %vm900 = vmand %vm892, %vm884
    %v901 = vadd.s32 %v827, 8
    %v902 = vadd.s32 %v834, 8
    %v903 = vadd.s32 %v841, 8
    %v904 = vadd.s32 %v848, 8
    %v905 = vadd.s32 %v855, 8
    %v906 = vadd.s32 %v862, 8
    %v907 = vadd.s32 %v869, 8
    %v908 = vadd.s32 %v876, 8
    %v909 = vsel %vm893, %v901, %v827
    %v910 = vsel %vm894, %v902, %v834
    %v911 = vsel %vm895, %v903, %v841
    %v912 = vsel %vm896, %v904, %v848
    %v913 = vsel %vm897, %v905, %v855
    %v914 = vsel %vm898, %v906, %v862
    %v915 = vsel %vm899, %v907, %v869
    %v916 = vsel %vm900, %v908, %v876
    %vm917 = vcmp.gt.s32.totalorder %v909, 0
    %vm918 = vcmp.gt.s32.totalorder %v910, 0
    %vm919 = vcmp.gt.s32.totalorder %v911, 0
    %vm920 = vcmp.gt.s32.totalorder %v912, 0
    %vm921 = vcmp.gt.s32.totalorder %v913, 0
    %vm922 = vcmp.gt.s32.totalorder %v914, 0
    %vm923 = vcmp.gt.s32.totalorder %v915, 0
    %vm924 = vcmp.gt.s32.totalorder %v916, 0
    %vm925 = vcmp.lt.s32.totalorder %v909, 7
    %vm926 = vcmp.lt.s32.totalorder %v910, 7
    %vm927 = vcmp.lt.s32.totalorder %v911, 7
    %vm928 = vcmp.lt.s32.totalorder %v912, 7
    %vm929 = vcmp.lt.s32.totalorder %v913, 7
    %vm930 = vcmp.lt.s32.totalorder %v914, 7
    %vm931 = vcmp.lt.s32.totalorder %v915, 7
    %vm932 = vcmp.lt.s32.totalorder %v916, 7
    %v933 = vmul.f32 %v796, 0.0
    %v934 = vmul.f32 %v797, 0.0
    %v935 = vmul.f32 %v798, 0.0
    %v936 = vmul.f32 %v799, 0.0
    %v937 = vmul.f32 %v800, 0.0
    %v938 = vmul.f32 %v801, 0.0
    %v939 = vmul.f32 %v802, 0.0
    %v940 = vmul.f32 %v803, 0.0
    %v941 = vmul.f32 %v804, 0.0
    %v942 = vmul.f32 %v805, 0.0
    %v943 = vmul.f32 %v806, 0.0
    %v944 = vmul.f32 %v807, 0.0
    %v945 = vmul.f32 %v808, 0.0
    %v946 = vmul.f32 %v809, 0.0
    %v947 = vmul.f32 %v810, 0.0
    %v948 = vmul.f32 %v811, 0.0
    %v949 = vadd.f32 %v780, %v933
    %v950 = vadd.f32 %v781, %v934
    %v951 = vadd.f32 %v782, %v935
    %v952 = vadd.f32 %v783, %v936
    %v953 = vadd.f32 %v784, %v937
    %v954 = vadd.f32 %v785, %v938
    %v955 = vadd.f32 %v786, %v939
    %v956 = vadd.f32 %v787, %v940
    %v957 = vadd.f32 %v788, %v941
    %v958 = vadd.f32 %v789, %v942
    %v959 = vadd.f32 %v790, %v943
    %v960 = vadd.f32 %v791, %v944
    %v961 = vadd.f32 %v792, %v945
    %v962 = vadd.f32 %v793, %v946
    %v963 = vadd.f32 %v794, %v947
    %v964 = vadd.f32 %v795, %v948
    %vm981 = vcmask 1040384
    %v982 = vrot.slane %v949, 7
    %v983 = vrot.slane %v950, 7
    %v984 = vrot.slane %v951, 7
    %v985 = vsel %vm981, %v982, %v984
    %v986 = vrot.slane %v952, 7
    %v987 = vsel %vm981, %v983, %v986
    %v988 = vrot.slane %v953, 7
    %v989 = vsel %vm981, %v984, %v988
    %v990 = vrot.slane %v954, 7
    %v991 = vsel %vm981, %v986, %v990
    %v992 = vrot.slane %v955, 7
    %v993 = vsel %vm981, %v988, %v992
    %v994 = vrot.slane %v956, 7
    %v995 = vsel %vm981, %v990, %v994
    %v996 = vrot.slane %v957, 7
    %v997 = vsel %vm981, %v992, %v996
    %v998 = vrot.slane %v958, 7
    %v999 = vsel %vm981, %v994, %v998
    %v1000 = vrot.slane %v959, 7
    %v1001 = vsel %vm981, %v996, %v1000
    %v1002 = vrot.slane %v960, 7
    %v1003 = vsel %vm981, %v998, %v1002
    %v1004 = vrot.slane %v961, 7
    %v1005 = vsel %vm981, %v1000, %v1004
    %v1006 = vrot.slane %v962, 7
    %v1007 = vsel %vm981, %v1002, %v1006
    %v1008 = vrot.slane %v963, 7
    %v1009 = vsel %vm981, %v1004, %v1008
    %v1010 = vrot.slane %v964, 7
    %v1011 = vsel %vm981, %v1006, %v1010
    %v1028 = vsel %vm981, 0.0, %v982
    %v1029 = vsel %vm981, 0.0, %v983
    %vm1030 = vcmask 1046528
    %v1031 = vrot.slane %v949, 1
    %v1032 = vrot.slane %v951, 1
    %v1033 = vsel %vm1030, %v1031, %v1032
    %v1034 = vrot.slane %v950, 1
    %v1035 = vrot.slane %v952, 1
    %v1036 = vsel %vm1030, %v1034, %v1035
    %v1037 = vrot.slane %v953, 1
    %v1038 = vsel %vm1030, %v1032, %v1037
    %v1039 = vrot.slane %v954, 1
    %v1040 = vsel %vm1030, %v1035, %v1039
    %v1041 = vrot.slane %v955, 1
    %v1042 = vsel %vm1030, %v1037, %v1041
    %v1043 = vrot.slane %v956, 1
    %v1044 = vsel %vm1030, %v1039, %v1043
    %v1045 = vrot.slane %v957, 1
    %v1046 = vsel %vm1030, %v1041, %v1045
    %v1047 = vrot.slane %v958, 1
    %v1048 = vsel %vm1030, %v1043, %v1047
    %v1049 = vrot.slane %v959, 1
    %v1050 = vsel %vm1030, %v1045, %v1049
    %v1051 = vrot.slane %v960, 1
    %v1052 = vsel %vm1030, %v1047, %v1051
    %v1053 = vrot.slane %v961, 1
    %v1054 = vsel %vm1030, %v1049, %v1053
    %v1055 = vrot.slane %v962, 1
    %v1056 = vsel %vm1030, %v1051, %v1055
    %v1057 = vrot.slane %v963, 1
    %v1058 = vsel %vm1030, %v1053, %v1057
    %v1059 = vrot.slane %v964, 1
    %v1060 = vsel %vm1030, %v1055, %v1059
    %v1077 = vsel %vm1030, %v1057, 0.0
    %v1078 = vsel %vm1030, %v1059, 0.0
    %v1079 = vadd.f32 %v951, 0.0
    %v1080 = vadd.f32 %v952, 0.0
    %v1081 = vadd.f32 %v949, %v953
    %v1082 = vadd.f32 %v950, %v954
    %v1083 = vadd.f32 %v951, %v955
    %v1084 = vadd.f32 %v952, %v956
    %v1085 = vadd.f32 %v953, %v957
    %v1086 = vadd.f32 %v954, %v958
    %v1087 = vadd.f32 %v955, %v959
    %v1088 = vadd.f32 %v956, %v960
    %v1089 = vadd.f32 %v957, %v961
    %v1090 = vadd.f32 %v958, %v962
    %v1091 = vadd.f32 %v959, %v963
    %v1092 = vadd.f32 %v960, %v964
    %v1093 = vadd.f32 %v961, 0.0
    %v1094 = vadd.f32 %v962, 0.0
    %v1095 = vsel %vm917, %v1028, 0.0
    %v1096 = vsel %vm917, %v1029, 0.0
    %v1097 = vsel %vm918, %v985, 0.0
    %v1098 = vsel %vm918, %v987, 0.0
    %v1099 = vsel %vm919, %v989, 0.0
    %v1100 = vsel %vm919, %v991, 0.0
    %v1101 = vsel %vm920, %v993, 0.0
    %v1102 = vsel %vm920, %v995, 0.0
    %v1103 = vsel %vm921, %v997, 0.0
    %v1104 = vsel %vm921, %v999, 0.0
    %v1105 = vsel %vm922, %v1001, 0.0
    %v1106 = vsel %vm922, %v1003, 0.0
    %v1107 = vsel %vm923, %v1005, 0.0
    %v1108 = vsel %vm923, %v1007, 0.0
    %v1109 = vsel %vm924, %v1009, 0.0
    %v1110 = vsel %vm924, %v1011, 0.0
    %v1111 = vadd.f32 %v1079, %v1095
    %v1112 = vadd.f32 %v1080, %v1096
    %v1113 = vadd.f32 %v1081, %v1097
    %v1114 = vadd.f32 %v1082, %v1098
    %v1115 = vadd.f32 %v1083, %v1099
    %v1116 = vadd.f32 %v1084, %v1100
    %v1117 = vadd.f32 %v1085, %v1101
    %v1118 = vadd.f32 %v1086, %v1102
    %v1119 = vadd.f32 %v1087, %v1103
    %v1120 = vadd.f32 %v1088, %v1104
    %v1121 = vadd.f32 %v1089, %v1105
    %v1122 = vadd.f32 %v1090, %v1106
    %v1123 = vadd.f32 %v1091, %v1107
    %v1124 = vadd.f32 %v1092, %v1108
    %v1125 = vadd.f32 %v1093, %v1109
    %v1126 = vadd.f32 %v1094, %v1110
    %v1127 = vsel %vm925, %v1033, 0.0
    %v1128 = vsel %vm925, %v1036, 0.0
    %v1129 = vsel %vm926, %v1038, 0.0
    %v1130 = vsel %vm926, %v1040, 0.0
    %v1131 = vsel %vm927, %v1042, 0.0
    %v1132 = vsel %vm927, %v1044, 0.0
    %v1133 = vsel %vm928, %v1046, 0.0
    %v1134 = vsel %vm928, %v1048, 0.0
    %v1135 = vsel %vm929, %v1050, 0.0
    %v1136 = vsel %vm929, %v1052, 0.0
    %v1137 = vsel %vm930, %v1054, 0.0
    %v1138 = vsel %vm930, %v1056, 0.0
    %v1139 = vsel %vm931, %v1058, 0.0
    %v1140 = vsel %vm931, %v1060, 0.0
    %v1141 = vsel %vm932, %v1077, 0.0
    %v1142 = vsel %vm932, %v1078, 0.0
    %v1143 = vadd.f32 %v1111, %v1127
    %v1144 = vadd.f32 %v1112, %v1128
    %v1145 = vadd.f32 %v1113, %v1129
    %v1146 = vadd.f32 %v1114, %v1130
    %v1147 = vadd.f32 %v1115, %v1131
    %v1148 = vadd.f32 %v1116, %v1132
    %v1149 = vadd.f32 %v1117, %v1133
    %v1150 = vadd.f32 %v1118, %v1134
    %v1151 = vadd.f32 %v1119, %v1135
    %v1152 = vadd.f32 %v1120, %v1136
    %v1153 = vadd.f32 %v1121, %v1137
    %v1154 = vadd.f32 %v1122, %v1138
    %v1155 = vadd.f32 %v1123, %v1139
    %v1156 = vadd.f32 %v1124, %v1140
    %v1157 = vadd.f32 %v1125, %v1141
    %v1158 = vadd.f32 %v1126, %v1142
    %v1159 = vmul.f32 %v796, %v1143
    %v1160 = vmul.f32 %v797, %v1144
    %v1161 = vmul.f32 %v798, %v1145
    %v1162 = vmul.f32 %v799, %v1146
    %v1163 = vmul.f32 %v800, %v1147
    %v1164 = vmul.f32 %v801, %v1148
    %v1165 = vmul.f32 %v802, %v1149
    %v1166 = vmul.f32 %v803, %v1150
    %v1167 = vmul.f32 %v804, %v1151
    %v1168 = vmul.f32 %v805, %v1152
    %v1169 = vmul.f32 %v806, %v1153
    %v1170 = vmul.f32 %v807, %v1154
    %v1171 = vmul.f32 %v808, %v1155
    %v1172 = vmul.f32 %v809, %v1156
    %v1173 = vmul.f32 %v810, %v1157
    %v1174 = vmul.f32 %v811, %v1158
    %v1175 = vadd.f32 %v780, %v1159
    %v1176 = vadd.f32 %v781, %v1160
    %v1177 = vadd.f32 %v782, %v1161
    %v1178 = vadd.f32 %v783, %v1162
    %v1179 = vadd.f32 %v784, %v1163
    %v1180 = vadd.f32 %v785, %v1164
    %v1181 = vadd.f32 %v786, %v1165
    %v1182 = vadd.f32 %v787, %v1166
    %v1183 = vadd.f32 %v788, %v1167
    %v1184 = vadd.f32 %v789, %v1168
    %v1185 = vadd.f32 %v790, %v1169
    %v1186 = vadd.f32 %v791, %v1170
    %v1187 = vadd.f32 %v792, %v1171
    %v1188 = vadd.f32 %v793, %v1172
    %v1189 = vadd.f32 %v794, %v1173
    %v1190 = vadd.f32 %v795, %v1174
    %v1207 = vrot.slane %v1175, 7
    %v1208 = vrot.slane %v1176, 7
    %v1209 = vrot.slane %v1177, 7
    %v1210 = vsel %vm981, %v1207, %v1209
    %v1211 = vrot.slane %v1178, 7
    %v1212 = vsel %vm981, %v1208, %v1211
    %v1213 = vrot.slane %v1179, 7
    %v1214 = vsel %vm981, %v1209, %v1213
    %v1215 = vrot.slane %v1180, 7
    %v1216 = vsel %vm981, %v1211, %v1215
    %v1217 = vrot.slane %v1181, 7
    %v1218 = vsel %vm981, %v1213, %v1217
    %v1219 = vrot.slane %v1182, 7
    %v1220 = vsel %vm981, %v1215, %v1219
    %v1221 = vrot.slane %v1183, 7
    %v1222 = vsel %vm981, %v1217, %v1221
    %v1223 = vrot.slane %v1184, 7
    %v1224 = vsel %vm981, %v1219, %v1223
    %v1225 = vrot.slane %v1185, 7
    %v1226 = vsel %vm981, %v1221, %v1225
    %v1227 = vrot.slane %v1186, 7
    %v1228 = vsel %vm981, %v1223, %v1227
    %v1229 = vrot.slane %v1187, 7
    %v1230 = vsel %vm981, %v1225, %v1229
    %v1231 = vrot.slane %v1188, 7
    %v1232 = vsel %vm981, %v1227, %v1231
    %v1233 = vrot.slane %v1189, 7
    %v1234 = vsel %vm981, %v1229, %v1233
    %v1235 = vrot.slane %v1190, 7
    %v1236 = vsel %vm981, %v1231, %v1235
    %v1253 = vsel %vm981, 0.0, %v1207
    %v1254 = vsel %vm981, 0.0, %v1208
    %v1255 = vrot.slane %v1175, 1
    %v1256 = vrot.slane %v1177, 1
    %v1257 = vsel %vm1030, %v1255, %v1256
    %v1258 = vrot.slane %v1176, 1
    %v1259 = vrot.slane %v1178, 1
    %v1260 = vsel %vm1030, %v1258, %v1259
    %v1261 = vrot.slane %v1179, 1
    %v1262 = vsel %vm1030, %v1256, %v1261
    %v1263 = vrot.slane %v1180, 1
    %v1264 = vsel %vm1030, %v1259, %v1263
    %v1265 = vrot.slane %v1181, 1
    %v1266 = vsel %vm1030, %v1261, %v1265
    %v1267 = vrot.slane %v1182, 1
    %v1268 = vsel %vm1030, %v1263, %v1267
    %v1269 = vrot.slane %v1183, 1
    %v1270 = vsel %vm1030, %v1265, %v1269
    %v1271 = vrot.slane %v1184, 1
    %v1272 = vsel %vm1030, %v1267, %v1271
    %v1273 = vrot.slane %v1185, 1
    %v1274 = vsel %vm1030, %v1269, %v1273
    %v1275 = vrot.slane %v1186, 1
    %v1276 = vsel %vm1030, %v1271, %v1275
    %v1277 = vrot.slane %v1187, 1
    %v1278 = vsel %vm1030, %v1273, %v1277
    %v1279 = vrot.slane %v1188, 1
    %v1280 = vsel %vm1030, %v1275, %v1279
    %v1281 = vrot.slane %v1189, 1
    %v1282 = vsel %vm1030, %v1277, %v1281
    %v1283 = vrot.slane %v1190, 1
    %v1284 = vsel %vm1030, %v1279, %v1283
    %v1301 = vsel %vm1030, %v1281, 0.0
    %v1302 = vsel %vm1030, %v1283, 0.0
    %v1303 = vadd.f32 %v1177, 0.0
    %v1304 = vadd.f32 %v1178, 0.0
    %v1305 = vadd.f32 %v1175, %v1179
    %v1306 = vadd.f32 %v1176, %v1180
    %v1307 = vadd.f32 %v1177, %v1181
    %v1308 = vadd.f32 %v1178, %v1182
    %v1309 = vadd.f32 %v1179, %v1183
    %v1310 = vadd.f32 %v1180, %v1184
    %v1311 = vadd.f32 %v1181, %v1185
    %v1312 = vadd.f32 %v1182, %v1186
    %v1313 = vadd.f32 %v1183, %v1187
    %v1314 = vadd.f32 %v1184, %v1188
    %v1315 = vadd.f32 %v1185, %v1189
    %v1316 = vadd.f32 %v1186, %v1190
    %v1317 = vadd.f32 %v1187, 0.0
    %v1318 = vadd.f32 %v1188, 0.0
    %v1319 = vsel %vm917, %v1253, 0.0
    %v1320 = vsel %vm917, %v1254, 0.0
    %v1321 = vsel %vm918, %v1210, 0.0
    %v1322 = vsel %vm918, %v1212, 0.0
    %v1323 = vsel %vm919, %v1214, 0.0
    %v1324 = vsel %vm919, %v1216, 0.0
    %v1325 = vsel %vm920, %v1218, 0.0
    %v1326 = vsel %vm920, %v1220, 0.0
    %v1327 = vsel %vm921, %v1222, 0.0
    %v1328 = vsel %vm921, %v1224, 0.0
    %v1329 = vsel %vm922, %v1226, 0.0
    %v1330 = vsel %vm922, %v1228, 0.0
    %v1331 = vsel %vm923, %v1230, 0.0
    %v1332 = vsel %vm923, %v1232, 0.0
    %v1333 = vsel %vm924, %v1234, 0.0
    %v1334 = vsel %vm924, %v1236, 0.0
    %v1335 = vadd.f32 %v1303, %v1319
    %v1336 = vadd.f32 %v1304, %v1320
    %v1337 = vadd.f32 %v1305, %v1321
    %v1338 = vadd.f32 %v1306, %v1322
    %v1339 = vadd.f32 %v1307, %v1323
    %v1340 = vadd.f32 %v1308, %v1324
    %v1341 = vadd.f32 %v1309, %v1325
    %v1342 = vadd.f32 %v1310, %v1326
    %v1343 = vadd.f32 %v1311, %v1327
    %v1344 = vadd.f32 %v1312, %v1328
    %v1345 = vadd.f32 %v1313, %v1329
    %v1346 = vadd.f32 %v1314, %v1330
    %v1347 = vadd.f32 %v1315, %v1331
    %v1348 = vadd.f32 %v1316, %v1332
    %v1349 = vadd.f32 %v1317, %v1333
    %v1350 = vadd.f32 %v1318, %v1334
    %v1351 = vsel %vm925, %v1257, 0.0
    %v1352 = vsel %vm925, %v1260, 0.0
    %v1353 = vsel %vm926, %v1262, 0.0
    %v1354 = vsel %vm926, %v1264, 0.0
    %v1355 = vsel %vm927, %v1266, 0.0
    %v1356 = vsel %vm927, %v1268, 0.0
    %v1357 = vsel %vm928, %v1270, 0.0
    %v1358 = vsel %vm928, %v1272, 0.0
    %v1359 = vsel %vm929, %v1274, 0.0
    %v1360 = vsel %vm929, %v1276, 0.0
    %v1361 = vsel %vm930, %v1278, 0.0
    %v1362 = vsel %vm930, %v1280, 0.0
    %v1363 = vsel %vm931, %v1282, 0.0
    %v1364 = vsel %vm931, %v1284, 0.0
    %v1365 = vsel %vm932, %v1301, 0.0
    %v1366 = vsel %vm932, %v1302, 0.0
    %v1367 = vadd.f32 %v1335, %v1351
    %v1368 = vadd.f32 %v1336, %v1352
    %v1369 = vadd.f32 %v1337, %v1353
    %v1370 = vadd.f32 %v1338, %v1354
    %v1371 = vadd.f32 %v1339, %v1355
    %v1372 = vadd.f32 %v1340, %v1356
    %v1373 = vadd.f32 %v1341, %v1357
    %v1374 = vadd.f32 %v1342, %v1358
    %v1375 = vadd.f32 %v1343, %v1359
    %v1376 = vadd.f32 %v1344, %v1360
    %v1377 = vadd.f32 %v1345, %v1361
    %v1378 = vadd.f32 %v1346, %v1362
    %v1379 = vadd.f32 %v1347, %v1363
    %v1380 = vadd.f32 %v1348, %v1364
    %v1381 = vadd.f32 %v1349, %v1365
    %v1382 = vadd.f32 %v1350, %v1366
    %v1383 = vmul.f32 %v796, %v1367
    %v1384 = vmul.f32 %v797, %v1368
    %v1385 = vmul.f32 %v798, %v1369
    %v1386 = vmul.f32 %v799, %v1370
    %v1387 = vmul.f32 %v800, %v1371
    %v1388 = vmul.f32 %v801, %v1372
    %v1389 = vmul.f32 %v802, %v1373
    %v1390 = vmul.f32 %v803, %v1374
    %v1391 = vmul.f32 %v804, %v1375
    %v1392 = vmul.f32 %v805, %v1376
    %v1393 = vmul.f32 %v806, %v1377
    %v1394 = vmul.f32 %v807, %v1378
    %v1395 = vmul.f32 %v808, %v1379
    %v1396 = vmul.f32 %v809, %v1380
    %v1397 = vmul.f32 %v810, %v1381
    %v1398 = vmul.f32 %v811, %v1382
    %v1399 = vadd.f32 %v780, %v1383
    %v1400 = vadd.f32 %v781, %v1384
    %v1401 = vadd.f32 %v782, %v1385
    %v1402 = vadd.f32 %v783, %v1386
    %v1403 = vadd.f32 %v784, %v1387
    %v1404 = vadd.f32 %v785, %v1388
    %v1405 = vadd.f32 %v786, %v1389
    %v1406 = vadd.f32 %v787, %v1390
    %v1407 = vadd.f32 %v788, %v1391
    %v1408 = vadd.f32 %v789, %v1392
    %v1409 = vadd.f32 %v790, %v1393
    %v1410 = vadd.f32 %v791, %v1394
    %v1411 = vadd.f32 %v792, %v1395
    %v1412 = vadd.f32 %v793, %v1396
    %v1413 = vadd.f32 %v794, %v1397
    %v1414 = vadd.f32 %v795, %v1398
    %v1431 = vrot.slane %v1399, 7
    %v1432 = vrot.slane %v1400, 7
    %v1433 = vrot.slane %v1401, 7
    %v1434 = vsel %vm981, %v1431, %v1433
    %v1435 = vrot.slane %v1402, 7
    %v1436 = vsel %vm981, %v1432, %v1435
    %v1437 = vrot.slane %v1403, 7
    %v1438 = vsel %vm981, %v1433, %v1437
    %v1439 = vrot.slane %v1404, 7
    %v1440 = vsel %vm981, %v1435, %v1439
    %v1441 = vrot.slane %v1405, 7
    %v1442 = vsel %vm981, %v1437, %v1441
    %v1443 = vrot.slane %v1406, 7
    %v1444 = vsel %vm981, %v1439, %v1443
    %v1445 = vrot.slane %v1407, 7
    %v1446 = vsel %vm981, %v1441, %v1445
    %v1447 = vrot.slane %v1408, 7
    %v1448 = vsel %vm981, %v1443, %v1447
    %v1449 = vrot.slane %v1409, 7
    %v1450 = vsel %vm981, %v1445, %v1449
    %v1451 = vrot.slane %v1410, 7
    %v1452 = vsel %vm981, %v1447, %v1451
    %v1453 = vrot.slane %v1411, 7
    %v1454 = vsel %vm981, %v1449, %v1453
    %v1455 = vrot.slane %v1412, 7
    %v1456 = vsel %vm981, %v1451, %v1455
    %v1457 = vrot.slane %v1413, 7
    %v1458 = vsel %vm981, %v1453, %v1457
    %v1459 = vrot.slane %v1414, 7
    %v1460 = vsel %vm981, %v1455, %v1459
    %v1477 = vsel %vm981, 0.0, %v1431
    %v1478 = vsel %vm981, 0.0, %v1432
    %v1479 = vrot.slane %v1399, 1
    %v1480 = vrot.slane %v1401, 1
    %v1481 = vsel %vm1030, %v1479, %v1480
    %v1482 = vrot.slane %v1400, 1
    %v1483 = vrot.slane %v1402, 1
    %v1484 = vsel %vm1030, %v1482, %v1483
    %v1485 = vrot.slane %v1403, 1
    %v1486 = vsel %vm1030, %v1480, %v1485
    %v1487 = vrot.slane %v1404, 1
    %v1488 = vsel %vm1030, %v1483, %v1487
    %v1489 = vrot.slane %v1405, 1
    %v1490 = vsel %vm1030, %v1485, %v1489
    %v1491 = vrot.slane %v1406, 1
    %v1492 = vsel %vm1030, %v1487, %v1491
    %v1493 = vrot.slane %v1407, 1
    %v1494 = vsel %vm1030, %v1489, %v1493
    %v1495 = vrot.slane %v1408, 1
    %v1496 = vsel %vm1030, %v1491, %v1495
    %v1497 = vrot.slane %v1409, 1
    %v1498 = vsel %vm1030, %v1493, %v1497
    %v1499 = vrot.slane %v1410, 1
    %v1500 = vsel %vm1030, %v1495, %v1499
    %v1501 = vrot.slane %v1411, 1
    %v1502 = vsel %vm1030, %v1497, %v1501
    %v1503 = vrot.slane %v1412, 1
    %v1504 = vsel %vm1030, %v1499, %v1503
    %v1505 = vrot.slane %v1413, 1
    %v1506 = vsel %vm1030, %v1501, %v1505
    %v1507 = vrot.slane %v1414, 1
    %v1508 = vsel %vm1030, %v1503, %v1507
    %v1525 = vsel %vm1030, %v1505, 0.0
    %v1526 = vsel %vm1030, %v1507, 0.0
    %v1527 = vadd.f32 %v1401, 0.0
    %v1528 = vadd.f32 %v1402, 0.0
    %v1529 = vadd.f32 %v1399, %v1403
    %v1530 = vadd.f32 %v1400, %v1404
    %v1531 = vadd.f32 %v1401, %v1405
    %v1532 = vadd.f32 %v1402, %v1406
    %v1533 = vadd.f32 %v1403, %v1407
    %v1534 = vadd.f32 %v1404, %v1408
    %v1535 = vadd.f32 %v1405, %v1409
    %v1536 = vadd.f32 %v1406, %v1410
    %v1537 = vadd.f32 %v1407, %v1411
    %v1538 = vadd.f32 %v1408, %v1412
    %v1539 = vadd.f32 %v1409, %v1413
    %v1540 = vadd.f32 %v1410, %v1414
    %v1541 = vadd.f32 %v1411, 0.0
    %v1542 = vadd.f32 %v1412, 0.0
    %v1543 = vsel %vm917, %v1477, 0.0
    %v1544 = vsel %vm917, %v1478, 0.0
    %v1545 = vsel %vm918, %v1434, 0.0
    %v1546 = vsel %vm918, %v1436, 0.0
    %v1547 = vsel %vm919, %v1438, 0.0
    %v1548 = vsel %vm919, %v1440, 0.0
    %v1549 = vsel %vm920, %v1442, 0.0
    %v1550 = vsel %vm920, %v1444, 0.0
    %v1551 = vsel %vm921, %v1446, 0.0
    %v1552 = vsel %vm921, %v1448, 0.0
    %v1553 = vsel %vm922, %v1450, 0.0
    %v1554 = vsel %vm922, %v1452, 0.0
    %v1555 = vsel %vm923, %v1454, 0.0
    %v1556 = vsel %vm923, %v1456, 0.0
    %v1557 = vsel %vm924, %v1458, 0.0
    %v1558 = vsel %vm924, %v1460, 0.0
    %v1559 = vadd.f32 %v1527, %v1543
    %v1560 = vadd.f32 %v1528, %v1544
    %v1561 = vadd.f32 %v1529, %v1545
    %v1562 = vadd.f32 %v1530, %v1546
    %v1563 = vadd.f32 %v1531, %v1547
    %v1564 = vadd.f32 %v1532, %v1548
    %v1565 = vadd.f32 %v1533, %v1549
    %v1566 = vadd.f32 %v1534, %v1550
    %v1567 = vadd.f32 %v1535, %v1551
    %v1568 = vadd.f32 %v1536, %v1552
    %v1569 = vadd.f32 %v1537, %v1553
    %v1570 = vadd.f32 %v1538, %v1554
    %v1571 = vadd.f32 %v1539, %v1555
    %v1572 = vadd.f32 %v1540, %v1556
    %v1573 = vadd.f32 %v1541, %v1557
    %v1574 = vadd.f32 %v1542, %v1558
    %v1575 = vsel %vm925, %v1481, 0.0
    %v1576 = vsel %vm925, %v1484, 0.0
    %v1577 = vsel %vm926, %v1486, 0.0
    %v1578 = vsel %vm926, %v1488, 0.0
    %v1579 = vsel %vm927, %v1490, 0.0
    %v1580 = vsel %vm927, %v1492, 0.0
    %v1581 = vsel %vm928, %v1494, 0.0
    %v1582 = vsel %vm928, %v1496, 0.0
    %v1583 = vsel %vm929, %v1498, 0.0
    %v1584 = vsel %vm929, %v1500, 0.0
    %v1585 = vsel %vm930, %v1502, 0.0
    %v1586 = vsel %vm930, %v1504, 0.0
    %v1587 = vsel %vm931, %v1506, 0.0
    %v1588 = vsel %vm931, %v1508, 0.0
    %v1589 = vsel %vm932, %v1525, 0.0
    %v1590 = vsel %vm932, %v1526, 0.0
    %v1591 = vadd.f32 %v1559, %v1575
    %v1592 = vadd.f32 %v1560, %v1576
    %v1593 = vadd.f32 %v1561, %v1577
    %v1594 = vadd.f32 %v1562, %v1578
    %v1595 = vadd.f32 %v1563, %v1579
    %v1596 = vadd.f32 %v1564, %v1580
    %v1597 = vadd.f32 %v1565, %v1581
    %v1598 = vadd.f32 %v1566, %v1582
    %v1599 = vadd.f32 %v1567, %v1583
    %v1600 = vadd.f32 %v1568, %v1584
    %v1601 = vadd.f32 %v1569, %v1585
    %v1602 = vadd.f32 %v1570, %v1586
    %v1603 = vadd.f32 %v1571, %v1587
    %v1604 = vadd.f32 %v1572, %v1588
    %v1605 = vadd.f32 %v1573, %v1589
    %v1606 = vadd.f32 %v1574, %v1590
    %v1607 = vmul.f32 %v796, %v1591
    %v1608 = vmul.f32 %v797, %v1592
    %v1609 = vmul.f32 %v798, %v1593
    %v1610 = vmul.f32 %v799, %v1594
    %v1611 = vmul.f32 %v800, %v1595
    %v1612 = vmul.f32 %v801, %v1596
    %v1613 = vmul.f32 %v802, %v1597
    %v1614 = vmul.f32 %v803, %v1598
    %v1615 = vmul.f32 %v804, %v1599
    %v1616 = vmul.f32 %v805, %v1600
    %v1617 = vmul.f32 %v806, %v1601
    %v1618 = vmul.f32 %v807, %v1602
    %v1619 = vmul.f32 %v808, %v1603
    %v1620 = vmul.f32 %v809, %v1604
    %v1621 = vmul.f32 %v810, %v1605
    %v1622 = vmul.f32 %v811, %v1606
    %v1623 = vadd.f32 %v780, %v1607
    %v1624 = vadd.f32 %v781, %v1608
    %v1625 = vadd.f32 %v782, %v1609
    %v1626 = vadd.f32 %v783, %v1610
    %v1627 = vadd.f32 %v784, %v1611
    %v1628 = vadd.f32 %v785, %v1612
    %v1629 = vadd.f32 %v786, %v1613
    %v1630 = vadd.f32 %v787, %v1614
    %v1631 = vadd.f32 %v788, %v1615
    %v1632 = vadd.f32 %v789, %v1616
    %v1633 = vadd.f32 %v790, %v1617
    %v1634 = vadd.f32 %v791, %v1618
    %v1635 = vadd.f32 %v792, %v1619
    %v1636 = vadd.f32 %v793, %v1620
    %v1637 = vadd.f32 %v794, %v1621
    %v1638 = vadd.f32 %v795, %v1622
    %v1655 = vrot.slane %v1623, 7
    %v1656 = vrot.slane %v1624, 7
    %v1657 = vrot.slane %v1625, 7
    %v1658 = vsel %vm981, %v1655, %v1657
    %v1659 = vrot.slane %v1626, 7
    %v1660 = vsel %vm981, %v1656, %v1659
    %v1661 = vrot.slane %v1627, 7
    %v1662 = vsel %vm981, %v1657, %v1661
    %v1663 = vrot.slane %v1628, 7
    %v1664 = vsel %vm981, %v1659, %v1663
    %v1665 = vrot.slane %v1629, 7
    %v1666 = vsel %vm981, %v1661, %v1665
    %v1667 = vrot.slane %v1630, 7
    %v1668 = vsel %vm981, %v1663, %v1667
    %v1669 = vrot.slane %v1631, 7
    %v1670 = vsel %vm981, %v1665, %v1669
    %v1671 = vrot.slane %v1632, 7
    %v1672 = vsel %vm981, %v1667, %v1671
    %v1673 = vrot.slane %v1633, 7
    %v1674 = vsel %vm981, %v1669, %v1673
    %v1675 = vrot.slane %v1634, 7
    %v1676 = vsel %vm981, %v1671, %v1675
    %v1677 = vrot.slane %v1635, 7
    %v1678 = vsel %vm981, %v1673, %v1677
    %v1679 = vrot.slane %v1636, 7
    %v1680 = vsel %vm981, %v1675, %v1679
    %v1681 = vrot.slane %v1637, 7
    %v1682 = vsel %vm981, %v1677, %v1681
    %v1683 = vrot.slane %v1638, 7
    %v1684 = vsel %vm981, %v1679, %v1683
    %v1701 = vsel %vm981, 0.0, %v1655
    %v1702 = vsel %vm981, 0.0, %v1656
    %v1703 = vrot.slane %v1623, 1
    %v1704 = vrot.slane %v1625, 1
    %v1705 = vsel %vm1030, %v1703, %v1704
    %v1706 = vrot.slane %v1624, 1
    %v1707 = vrot.slane %v1626, 1
    %v1708 = vsel %vm1030, %v1706, %v1707
    %v1709 = vrot.slane %v1627, 1
    %v1710 = vsel %vm1030, %v1704, %v1709
    %v1711 = vrot.slane %v1628, 1
    %v1712 = vsel %vm1030, %v1707, %v1711
    %v1713 = vrot.slane %v1629, 1
    %v1714 = vsel %vm1030, %v1709, %v1713
    %v1715 = vrot.slane %v1630, 1
    %v1716 = vsel %vm1030, %v1711, %v1715
    %v1717 = vrot.slane %v1631, 1
    %v1718 = vsel %vm1030, %v1713, %v1717
    %v1719 = vrot.slane %v1632, 1
    %v1720 = vsel %vm1030, %v1715, %v1719
    %v1721 = vrot.slane %v1633, 1
    %v1722 = vsel %vm1030, %v1717, %v1721
    %v1723 = vrot.slane %v1634, 1
    %v1724 = vsel %vm1030, %v1719, %v1723
    %v1725 = vrot.slane %v1635, 1
    %v1726 = vsel %vm1030, %v1721, %v1725
    %v1727 = vrot.slane %v1636, 1
    %v1728 = vsel %vm1030, %v1723, %v1727
    %v1729 = vrot.slane %v1637, 1
    %v1730 = vsel %vm1030, %v1725, %v1729
    %v1731 = vrot.slane %v1638, 1
    %v1732 = vsel %vm1030, %v1727, %v1731
    %v1749 = vsel %vm1030, %v1729, 0.0
    %v1750 = vsel %vm1030, %v1731, 0.0
    %v1751 = vadd.f32 %v1625, 0.0
    %v1752 = vadd.f32 %v1626, 0.0
    %v1753 = vadd.f32 %v1623, %v1627
    %v1754 = vadd.f32 %v1624, %v1628
    %v1755 = vadd.f32 %v1625, %v1629
    %v1756 = vadd.f32 %v1626, %v1630
    %v1757 = vadd.f32 %v1627, %v1631
    %v1758 = vadd.f32 %v1628, %v1632
    %v1759 = vadd.f32 %v1629, %v1633
    %v1760 = vadd.f32 %v1630, %v1634
    %v1761 = vadd.f32 %v1631, %v1635
    %v1762 = vadd.f32 %v1632, %v1636
    %v1763 = vadd.f32 %v1633, %v1637
    %v1764 = vadd.f32 %v1634, %v1638
    %v1765 = vadd.f32 %v1635, 0.0
    %v1766 = vadd.f32 %v1636, 0.0
    %v1767 = vsel %vm917, %v1701, 0.0
    %v1768 = vsel %vm917, %v1702, 0.0
    %v1769 = vsel %vm918, %v1658, 0.0
    %v1770 = vsel %vm918, %v1660, 0.0
    %v1771 = vsel %vm919, %v1662, 0.0
    %v1772 = vsel %vm919, %v1664, 0.0
    %v1773 = vsel %vm920, %v1666, 0.0
    %v1774 = vsel %vm920, %v1668, 0.0
    %v1775 = vsel %vm921, %v1670, 0.0
    %v1776 = vsel %vm921, %v1672, 0.0
    %v1777 = vsel %vm922, %v1674, 0.0
    %v1778 = vsel %vm922, %v1676, 0.0
    %v1779 = vsel %vm923, %v1678, 0.0
    %v1780 = vsel %vm923, %v1680, 0.0
    %v1781 = vsel %vm924, %v1682, 0.0
    %v1782 = vsel %vm924, %v1684, 0.0
    %v1783 = vadd.f32 %v1751, %v1767
    %v1784 = vadd.f32 %v1752, %v1768
    %v1785 = vadd.f32 %v1753, %v1769
    %v1786 = vadd.f32 %v1754, %v1770
    %v1787 = vadd.f32 %v1755, %v1771
    %v1788 = vadd.f32 %v1756, %v1772
    %v1789 = vadd.f32 %v1757, %v1773
    %v1790 = vadd.f32 %v1758, %v1774
    %v1791 = vadd.f32 %v1759, %v1775
    %v1792 = vadd.f32 %v1760, %v1776
    %v1793 = vadd.f32 %v1761, %v1777
    %v1794 = vadd.f32 %v1762, %v1778
    %v1795 = vadd.f32 %v1763, %v1779
    %v1796 = vadd.f32 %v1764, %v1780
    %v1797 = vadd.f32 %v1765, %v1781
    %v1798 = vadd.f32 %v1766, %v1782
    %v1799 = vsel %vm925, %v1705, 0.0
    %v1800 = vsel %vm925, %v1708, 0.0
    %v1801 = vsel %vm926, %v1710, 0.0
    %v1802 = vsel %vm926, %v1712, 0.0
    %v1803 = vsel %vm927, %v1714, 0.0
    %v1804 = vsel %vm927, %v1716, 0.0
    %v1805 = vsel %vm928, %v1718, 0.0
    %v1806 = vsel %vm928, %v1720, 0.0
    %v1807 = vsel %vm929, %v1722, 0.0
    %v1808 = vsel %vm929, %v1724, 0.0
    %v1809 = vsel %vm930, %v1726, 0.0
    %v1810 = vsel %vm930, %v1728, 0.0
    %v1811 = vsel %vm931, %v1730, 0.0
    %v1812 = vsel %vm931, %v1732, 0.0
    %v1813 = vsel %vm932, %v1749, 0.0
    %v1814 = vsel %vm932, %v1750, 0.0
    %v1815 = vadd.f32 %v1783, %v1799
    %v1816 = vadd.f32 %v1784, %v1800
    %v1817 = vadd.f32 %v1785, %v1801
    %v1818 = vadd.f32 %v1786, %v1802
    %v1819 = vadd.f32 %v1787, %v1803
    %v1820 = vadd.f32 %v1788, %v1804
    %v1821 = vadd.f32 %v1789, %v1805
    %v1822 = vadd.f32 %v1790, %v1806
    %v1823 = vadd.f32 %v1791, %v1807
    %v1824 = vadd.f32 %v1792, %v1808
    %v1825 = vadd.f32 %v1793, %v1809
    %v1826 = vadd.f32 %v1794, %v1810
    %v1827 = vadd.f32 %v1795, %v1811
    %v1828 = vadd.f32 %v1796, %v1812
    %v1829 = vadd.f32 %v1797, %v1813
    %v1830 = vadd.f32 %v1798, %v1814
    %v1831 = vmul.f32 %v796, %v1815
    %v1832 = vmul.f32 %v797, %v1816
    %v1833 = vmul.f32 %v798, %v1817
    %v1834 = vmul.f32 %v799, %v1818
    %v1835 = vmul.f32 %v800, %v1819
    %v1836 = vmul.f32 %v801, %v1820
    %v1837 = vmul.f32 %v802, %v1821
    %v1838 = vmul.f32 %v803, %v1822
    %v1839 = vmul.f32 %v804, %v1823
    %v1840 = vmul.f32 %v805, %v1824
    %v1841 = vmul.f32 %v806, %v1825
    %v1842 = vmul.f32 %v807, %v1826
    %v1843 = vmul.f32 %v808, %v1827
    %v1844 = vmul.f32 %v809, %v1828
    %v1845 = vmul.f32 %v810, %v1829
    %v1846 = vmul.f32 %v811, %v1830
    %v1847 = vadd.f32 %v780, %v1831
    %v1848 = vadd.f32 %v781, %v1832
    %v1849 = vadd.f32 %v782, %v1833
    %v1850 = vadd.f32 %v783, %v1834
    %v1851 = vadd.f32 %v784, %v1835
    %v1852 = vadd.f32 %v785, %v1836
    %v1853 = vadd.f32 %v786, %v1837
    %v1854 = vadd.f32 %v787, %v1838
    %v1855 = vadd.f32 %v788, %v1839
    %v1856 = vadd.f32 %v789, %v1840
    %v1857 = vadd.f32 %v790, %v1841
    %v1858 = vadd.f32 %v791, %v1842
    %v1859 = vadd.f32 %v792, %v1843
    %v1860 = vadd.f32 %v793, %v1844
    %v1861 = vadd.f32 %v794, %v1845
    %v1862 = vadd.f32 %v795, %v1846
    %v1879 = vrot.slane %v1847, 7
    %v1880 = vrot.slane %v1848, 7
    %v1881 = vrot.slane %v1849, 7
    %v1882 = vsel %vm981, %v1879, %v1881
    %v1883 = vrot.slane %v1850, 7
    %v1884 = vsel %vm981, %v1880, %v1883
    %v1885 = vrot.slane %v1851, 7
    %v1886 = vsel %vm981, %v1881, %v1885
    %v1887 = vrot.slane %v1852, 7
    %v1888 = vsel %vm981, %v1883, %v1887
    %v1889 = vrot.slane %v1853, 7
    %v1890 = vsel %vm981, %v1885, %v1889
    %v1891 = vrot.slane %v1854, 7
    %v1892 = vsel %vm981, %v1887, %v1891
    %v1893 = vrot.slane %v1855, 7
    %v1894 = vsel %vm981, %v1889, %v1893
    %v1895 = vrot.slane %v1856, 7
    %v1896 = vsel %vm981, %v1891, %v1895
    %v1897 = vrot.slane %v1857, 7
    %v1898 = vsel %vm981, %v1893, %v1897
    %v1899 = vrot.slane %v1858, 7
    %v1900 = vsel %vm981, %v1895, %v1899
    %v1901 = vrot.slane %v1859, 7
    %v1902 = vsel %vm981, %v1897, %v1901
    %v1903 = vrot.slane %v1860, 7
    %v1904 = vsel %vm981, %v1899, %v1903
    %v1905 = vrot.slane %v1861, 7
    %v1906 = vsel %vm981, %v1901, %v1905
    %v1907 = vrot.slane %v1862, 7
    %v1908 = vsel %vm981, %v1903, %v1907
    %v1925 = vsel %vm981, 0.0, %v1879
    %v1926 = vsel %vm981, 0.0, %v1880
    %v1927 = vrot.slane %v1847, 1
    %v1928 = vrot.slane %v1849, 1
    %v1929 = vsel %vm1030, %v1927, %v1928
    %v1930 = vrot.slane %v1848, 1
    %v1931 = vrot.slane %v1850, 1
    %v1932 = vsel %vm1030, %v1930, %v1931
    %v1933 = vrot.slane %v1851, 1
    %v1934 = vsel %vm1030, %v1928, %v1933
    %v1935 = vrot.slane %v1852, 1
    %v1936 = vsel %vm1030, %v1931, %v1935
    %v1937 = vrot.slane %v1853, 1
    %v1938 = vsel %vm1030, %v1933, %v1937
    %v1939 = vrot.slane %v1854, 1
    %v1940 = vsel %vm1030, %v1935, %v1939
    %v1941 = vrot.slane %v1855, 1
    %v1942 = vsel %vm1030, %v1937, %v1941
    %v1943 = vrot.slane %v1856, 1
    %v1944 = vsel %vm1030, %v1939, %v1943
    %v1945 = vrot.slane %v1857, 1
    %v1946 = vsel %vm1030, %v1941, %v1945
    %v1947 = vrot.slane %v1858, 1
    %v1948 = vsel %vm1030, %v1943, %v1947
    %v1949 = vrot.slane %v1859, 1
    %v1950 = vsel %vm1030, %v1945, %v1949
    %v1951 = vrot.slane %v1860, 1
    %v1952 = vsel %vm1030, %v1947, %v1951
    %v1953 = vrot.slane %v1861, 1
    %v1954 = vsel %vm1030, %v1949, %v1953
    %v1955 = vrot.slane %v1862, 1
    %v1956 = vsel %vm1030, %v1951, %v1955
    %v1973 = vsel %vm1030, %v1953, 0.0
    %v1974 = vsel %vm1030, %v1955, 0.0
    %v1975 = vadd.f32 %v1849, 0.0
    %v1976 = vadd.f32 %v1850, 0.0
    %v1977 = vadd.f32 %v1847, %v1851
    %v1978 = vadd.f32 %v1848, %v1852
    %v1979 = vadd.f32 %v1849, %v1853
    %v1980 = vadd.f32 %v1850, %v1854
    %v1981 = vadd.f32 %v1851, %v1855
    %v1982 = vadd.f32 %v1852, %v1856
    %v1983 = vadd.f32 %v1853, %v1857
    %v1984 = vadd.f32 %v1854, %v1858
    %v1985 = vadd.f32 %v1855, %v1859
    %v1986 = vadd.f32 %v1856, %v1860
    %v1987 = vadd.f32 %v1857, %v1861
    %v1988 = vadd.f32 %v1858, %v1862
    %v1989 = vadd.f32 %v1859, 0.0
    %v1990 = vadd.f32 %v1860, 0.0
    %v1991 = vsel %vm917, %v1925, 0.0
    %v1992 = vsel %vm917, %v1926, 0.0
    %v1993 = vsel %vm918, %v1882, 0.0
    %v1994 = vsel %vm918, %v1884, 0.0
    %v1995 = vsel %vm919, %v1886, 0.0
    %v1996 = vsel %vm919, %v1888, 0.0
    %v1997 = vsel %vm920, %v1890, 0.0
    %v1998 = vsel %vm920, %v1892, 0.0
    %v1999 = vsel %vm921, %v1894, 0.0
    %v2000 = vsel %vm921, %v1896, 0.0
    %v2001 = vsel %vm922, %v1898, 0.0
    %v2002 = vsel %vm922, %v1900, 0.0
    %v2003 = vsel %vm923, %v1902, 0.0
    %v2004 = vsel %vm923, %v1904, 0.0
    %v2005 = vsel %vm924, %v1906, 0.0
    %v2006 = vsel %vm924, %v1908, 0.0
    %v2007 = vadd.f32 %v1975, %v1991
    %v2008 = vadd.f32 %v1976, %v1992
    %v2009 = vadd.f32 %v1977, %v1993
    %v2010 = vadd.f32 %v1978, %v1994
    %v2011 = vadd.f32 %v1979, %v1995
    %v2012 = vadd.f32 %v1980, %v1996
    %v2013 = vadd.f32 %v1981, %v1997
    %v2014 = vadd.f32 %v1982, %v1998
    %v2015 = vadd.f32 %v1983, %v1999
    %v2016 = vadd.f32 %v1984, %v2000
    %v2017 = vadd.f32 %v1985, %v2001
    %v2018 = vadd.f32 %v1986, %v2002
    %v2019 = vadd.f32 %v1987, %v2003
    %v2020 = vadd.f32 %v1988, %v2004
    %v2021 = vadd.f32 %v1989, %v2005
    %v2022 = vadd.f32 %v1990, %v2006
    %v2023 = vsel %vm925, %v1929, 0.0
    %v2024 = vsel %vm925, %v1932, 0.0
    %v2025 = vsel %vm926, %v1934, 0.0
    %v2026 = vsel %vm926, %v1936, 0.0
    %v2027 = vsel %vm927, %v1938, 0.0
    %v2028 = vsel %vm927, %v1940, 0.0
    %v2029 = vsel %vm928, %v1942, 0.0
    %v2030 = vsel %vm928, %v1944, 0.0
    %v2031 = vsel %vm929, %v1946, 0.0
    %v2032 = vsel %vm929, %v1948, 0.0
    %v2033 = vsel %vm930, %v1950, 0.0
    %v2034 = vsel %vm930, %v1952, 0.0
    %v2035 = vsel %vm931, %v1954, 0.0
    %v2036 = vsel %vm931, %v1956, 0.0
    %v2037 = vsel %vm932, %v1973, 0.0
    %v2038 = vsel %vm932, %v1974, 0.0
    %v2039 = vadd.f32 %v2007, %v2023
    %v2040 = vadd.f32 %v2008, %v2024
    %v2041 = vadd.f32 %v2009, %v2025
    %v2042 = vadd.f32 %v2010, %v2026
    %v2043 = vadd.f32 %v2011, %v2027
    %v2044 = vadd.f32 %v2012, %v2028
    %v2045 = vadd.f32 %v2013, %v2029
    %v2046 = vadd.f32 %v2014, %v2030
    %v2047 = vadd.f32 %v2015, %v2031
    %v2048 = vadd.f32 %v2016, %v2032
    %v2049 = vadd.f32 %v2017, %v2033
    %v2050 = vadd.f32 %v2018, %v2034
    %v2051 = vadd.f32 %v2019, %v2035
    %v2052 = vadd.f32 %v2020, %v2036
    %v2053 = vadd.f32 %v2021, %v2037
    %v2054 = vadd.f32 %v2022, %v2038
    %v2055 = vmul.f32 %v796, %v2039
    %v2056 = vmul.f32 %v797, %v2040
    %v2057 = vmul.f32 %v798, %v2041
    %v2058 = vmul.f32 %v799, %v2042
    %v2059 = vmul.f32 %v800, %v2043
    %v2060 = vmul.f32 %v801, %v2044
    %v2061 = vmul.f32 %v802, %v2045
    %v2062 = vmul.f32 %v803, %v2046
    %v2063 = vmul.f32 %v804, %v2047
    %v2064 = vmul.f32 %v805, %v2048
    %v2065 = vmul.f32 %v806, %v2049
    %v2066 = vmul.f32 %v807, %v2050
    %v2067 = vmul.f32 %v808, %v2051
    %v2068 = vmul.f32 %v809, %v2052
    %v2069 = vmul.f32 %v810, %v2053
    %v2070 = vmul.f32 %v811, %v2054
    %v2071 = vadd.f32 %v780, %v2055
    %v2072 = vadd.f32 %v781, %v2056
    %v2073 = vadd.f32 %v782, %v2057
    %v2074 = vadd.f32 %v783, %v2058
    %v2075 = vadd.f32 %v784, %v2059
    %v2076 = vadd.f32 %v785, %v2060
    %v2077 = vadd.f32 %v786, %v2061
    %v2078 = vadd.f32 %v787, %v2062
    %v2079 = vadd.f32 %v788, %v2063
    %v2080 = vadd.f32 %v789, %v2064
    %v2081 = vadd.f32 %v790, %v2065
    %v2082 = vadd.f32 %v791, %v2066
    %v2083 = vadd.f32 %v792, %v2067
    %v2084 = vadd.f32 %v793, %v2068
    %v2085 = vadd.f32 %v794, %v2069
    %v2086 = vadd.f32 %v795, %v2070
    %v2103 = vrot.slane %v2071, 7
    %v2104 = vrot.slane %v2072, 7
    %v2105 = vrot.slane %v2073, 7
    %v2106 = vsel %vm981, %v2103, %v2105
    %v2107 = vrot.slane %v2074, 7
    %v2108 = vsel %vm981, %v2104, %v2107
    %v2109 = vrot.slane %v2075, 7
    %v2110 = vsel %vm981, %v2105, %v2109
    %v2111 = vrot.slane %v2076, 7
    %v2112 = vsel %vm981, %v2107, %v2111
    %v2113 = vrot.slane %v2077, 7
    %v2114 = vsel %vm981, %v2109, %v2113
    %v2115 = vrot.slane %v2078, 7
    %v2116 = vsel %vm981, %v2111, %v2115
    %v2117 = vrot.slane %v2079, 7
    %v2118 = vsel %vm981, %v2113, %v2117
    %v2119 = vrot.slane %v2080, 7
    %v2120 = vsel %vm981, %v2115, %v2119
    %v2121 = vrot.slane %v2081, 7
    %v2122 = vsel %vm981, %v2117, %v2121
    %v2123 = vrot.slane %v2082, 7
    %v2124 = vsel %vm981, %v2119, %v2123
    %v2125 = vrot.slane %v2083, 7
    %v2126 = vsel %vm981, %v2121, %v2125
    %v2127 = vrot.slane %v2084, 7
    %v2128 = vsel %vm981, %v2123, %v2127
    %v2129 = vrot.slane %v2085, 7
    %v2130 = vsel %vm981, %v2125, %v2129
    %v2131 = vrot.slane %v2086, 7
    %v2132 = vsel %vm981, %v2127, %v2131
    %v2149 = vsel %vm981, 0.0, %v2103
    %v2150 = vsel %vm981, 0.0, %v2104
    %v2151 = vrot.slane %v2071, 1
    %v2152 = vrot.slane %v2073, 1
    %v2153 = vsel %vm1030, %v2151, %v2152
    %v2154 = vrot.slane %v2072, 1
    %v2155 = vrot.slane %v2074, 1
    %v2156 = vsel %vm1030, %v2154, %v2155
    %v2157 = vrot.slane %v2075, 1
    %v2158 = vsel %vm1030, %v2152, %v2157
    %v2159 = vrot.slane %v2076, 1
    %v2160 = vsel %vm1030, %v2155, %v2159
    %v2161 = vrot.slane %v2077, 1
    %v2162 = vsel %vm1030, %v2157, %v2161
    %v2163 = vrot.slane %v2078, 1
    %v2164 = vsel %vm1030, %v2159, %v2163
    %v2165 = vrot.slane %v2079, 1
    %v2166 = vsel %vm1030, %v2161, %v2165
    %v2167 = vrot.slane %v2080, 1
    %v2168 = vsel %vm1030, %v2163, %v2167
    %v2169 = vrot.slane %v2081, 1
    %v2170 = vsel %vm1030, %v2165, %v2169
    %v2171 = vrot.slane %v2082, 1
    %v2172 = vsel %vm1030, %v2167, %v2171
    %v2173 = vrot.slane %v2083, 1
    %v2174 = vsel %vm1030, %v2169, %v2173
    %v2175 = vrot.slane %v2084, 1
    %v2176 = vsel %vm1030, %v2171, %v2175
    %v2177 = vrot.slane %v2085, 1
    %v2178 = vsel %vm1030, %v2173, %v2177
    %v2179 = vrot.slane %v2086, 1
    %v2180 = vsel %vm1030, %v2175, %v2179
    %v2197 = vsel %vm1030, %v2177, 0.0
    %v2198 = vsel %vm1030, %v2179, 0.0
    %v2199 = vadd.f32 %v2073, 0.0
    %v2200 = vadd.f32 %v2074, 0.0
    %v2201 = vadd.f32 %v2071, %v2075
    %v2202 = vadd.f32 %v2072, %v2076
    %v2203 = vadd.f32 %v2073, %v2077
    %v2204 = vadd.f32 %v2074, %v2078
    %v2205 = vadd.f32 %v2075, %v2079
    %v2206 = vadd.f32 %v2076, %v2080
    %v2207 = vadd.f32 %v2077, %v2081
    %v2208 = vadd.f32 %v2078, %v2082
    %v2209 = vadd.f32 %v2079, %v2083
    %v2210 = vadd.f32 %v2080, %v2084
    %v2211 = vadd.f32 %v2081, %v2085
    %v2212 = vadd.f32 %v2082, %v2086
    %v2213 = vadd.f32 %v2083, 0.0
    %v2214 = vadd.f32 %v2084, 0.0
    %v2215 = vsel %vm917, %v2149, 0.0
    %v2216 = vsel %vm917, %v2150, 0.0
    %v2217 = vsel %vm918, %v2106, 0.0
    %v2218 = vsel %vm918, %v2108, 0.0
    %v2219 = vsel %vm919, %v2110, 0.0
    %v2220 = vsel %vm919, %v2112, 0.0
    %v2221 = vsel %vm920, %v2114, 0.0
    %v2222 = vsel %vm920, %v2116, 0.0
    %v2223 = vsel %vm921, %v2118, 0.0
    %v2224 = vsel %vm921, %v2120, 0.0
    %v2225 = vsel %vm922, %v2122, 0.0
    %v2226 = vsel %vm922, %v2124, 0.0
    %v2227 = vsel %vm923, %v2126, 0.0
    %v2228 = vsel %vm923, %v2128, 0.0
    %v2229 = vsel %vm924, %v2130, 0.0
    %v2230 = vsel %vm924, %v2132, 0.0
    %v2231 = vadd.f32 %v2199, %v2215
    %v2232 = vadd.f32 %v2200, %v2216
    %v2233 = vadd.f32 %v2201, %v2217
    %v2234 = vadd.f32 %v2202, %v2218
    %v2235 = vadd.f32 %v2203, %v2219
    %v2236 = vadd.f32 %v2204, %v2220
    %v2237 = vadd.f32 %v2205, %v2221
    %v2238 = vadd.f32 %v2206, %v2222
    %v2239 = vadd.f32 %v2207, %v2223
    %v2240 = vadd.f32 %v2208, %v2224
    %v2241 = vadd.f32 %v2209, %v2225
    %v2242 = vadd.f32 %v2210, %v2226
    %v2243 = vadd.f32 %v2211, %v2227
    %v2244 = vadd.f32 %v2212, %v2228
    %v2245 = vadd.f32 %v2213, %v2229
    %v2246 = vadd.f32 %v2214, %v2230
    %v2247 = vsel %vm925, %v2153, 0.0
    %v2248 = vsel %vm925, %v2156, 0.0
    %v2249 = vsel %vm926, %v2158, 0.0
    %v2250 = vsel %vm926, %v2160, 0.0
    %v2251 = vsel %vm927, %v2162, 0.0
    %v2252 = vsel %vm927, %v2164, 0.0
    %v2253 = vsel %vm928, %v2166, 0.0
    %v2254 = vsel %vm928, %v2168, 0.0
    %v2255 = vsel %vm929, %v2170, 0.0
    %v2256 = vsel %vm929, %v2172, 0.0
    %v2257 = vsel %vm930, %v2174, 0.0
    %v2258 = vsel %vm930, %v2176, 0.0
    %v2259 = vsel %vm931, %v2178, 0.0
    %v2260 = vsel %vm931, %v2180, 0.0
    %v2261 = vsel %vm932, %v2197, 0.0
    %v2262 = vsel %vm932, %v2198, 0.0
    %v2263 = vadd.f32 %v2231, %v2247
    %v2264 = vadd.f32 %v2232, %v2248
    %v2265 = vadd.f32 %v2233, %v2249
    %v2266 = vadd.f32 %v2234, %v2250
    %v2267 = vadd.f32 %v2235, %v2251
    %v2268 = vadd.f32 %v2236, %v2252
    %v2269 = vadd.f32 %v2237, %v2253
    %v2270 = vadd.f32 %v2238, %v2254
    %v2271 = vadd.f32 %v2239, %v2255
    %v2272 = vadd.f32 %v2240, %v2256
    %v2273 = vadd.f32 %v2241, %v2257
    %v2274 = vadd.f32 %v2242, %v2258
    %v2275 = vadd.f32 %v2243, %v2259
    %v2276 = vadd.f32 %v2244, %v2260
    %v2277 = vadd.f32 %v2245, %v2261
    %v2278 = vadd.f32 %v2246, %v2262
    %v2279 = vmul.f32 %v796, %v2263
    %v2280 = vmul.f32 %v797, %v2264
    %v2281 = vmul.f32 %v798, %v2265
    %v2282 = vmul.f32 %v799, %v2266
    %v2283 = vmul.f32 %v800, %v2267
    %v2284 = vmul.f32 %v801, %v2268
    %v2285 = vmul.f32 %v802, %v2269
    %v2286 = vmul.f32 %v803, %v2270
    %v2287 = vmul.f32 %v804, %v2271
    %v2288 = vmul.f32 %v805, %v2272
    %v2289 = vmul.f32 %v806, %v2273
    %v2290 = vmul.f32 %v807, %v2274
    %v2291 = vmul.f32 %v808, %v2275
    %v2292 = vmul.f32 %v809, %v2276
    %v2293 = vmul.f32 %v810, %v2277
    %v2294 = vmul.f32 %v811, %v2278
    %v2295 = vadd.f32 %v780, %v2279
    %v2296 = vadd.f32 %v781, %v2280
    %v2297 = vadd.f32 %v782, %v2281
    %v2298 = vadd.f32 %v783, %v2282
    %v2299 = vadd.f32 %v784, %v2283
    %v2300 = vadd.f32 %v785, %v2284
    %v2301 = vadd.f32 %v786, %v2285
    %v2302 = vadd.f32 %v787, %v2286
    %v2303 = vadd.f32 %v788, %v2287
    %v2304 = vadd.f32 %v789, %v2288
    %v2305 = vadd.f32 %v790, %v2289
    %v2306 = vadd.f32 %v791, %v2290
    %v2307 = vadd.f32 %v792, %v2291
    %v2308 = vadd.f32 %v793, %v2292
    %v2309 = vadd.f32 %v794, %v2293
    %v2310 = vadd.f32 %v795, %v2294
    %v2327 = vrot.slane %v2295, 7
    %v2328 = vrot.slane %v2296, 7
    %v2329 = vrot.slane %v2297, 7
    %v2330 = vsel %vm981, %v2327, %v2329
    %v2331 = vrot.slane %v2298, 7
    %v2332 = vsel %vm981, %v2328, %v2331
    %v2333 = vrot.slane %v2299, 7
    %v2334 = vsel %vm981, %v2329, %v2333
    %v2335 = vrot.slane %v2300, 7
    %v2336 = vsel %vm981, %v2331, %v2335
    %v2337 = vrot.slane %v2301, 7
    %v2338 = vsel %vm981, %v2333, %v2337
    %v2339 = vrot.slane %v2302, 7
    %v2340 = vsel %vm981, %v2335, %v2339
    %v2341 = vrot.slane %v2303, 7
    %v2342 = vsel %vm981, %v2337, %v2341
    %v2343 = vrot.slane %v2304, 7
    %v2344 = vsel %vm981, %v2339, %v2343
    %v2345 = vrot.slane %v2305, 7
    %v2346 = vsel %vm981, %v2341, %v2345
    %v2347 = vrot.slane %v2306, 7
    %v2348 = vsel %vm981, %v2343, %v2347
    %v2349 = vrot.slane %v2307, 7
    %v2350 = vsel %vm981, %v2345, %v2349
    %v2351 = vrot.slane %v2308, 7
    %v2352 = vsel %vm981, %v2347, %v2351
    %v2353 = vrot.slane %v2309, 7
    %v2354 = vsel %vm981, %v2349, %v2353
    %v2355 = vrot.slane %v2310, 7
    %v2356 = vsel %vm981, %v2351, %v2355
    %v2373 = vsel %vm981, 0.0, %v2327
    %v2374 = vsel %vm981, 0.0, %v2328
    %v2375 = vrot.slane %v2295, 1
    %v2376 = vrot.slane %v2297, 1
    %v2377 = vsel %vm1030, %v2375, %v2376
    %v2378 = vrot.slane %v2296, 1
    %v2379 = vrot.slane %v2298, 1
    %v2380 = vsel %vm1030, %v2378, %v2379
    %v2381 = vrot.slane %v2299, 1
    %v2382 = vsel %vm1030, %v2376, %v2381
    %v2383 = vrot.slane %v2300, 1
    %v2384 = vsel %vm1030, %v2379, %v2383
    %v2385 = vrot.slane %v2301, 1
    %v2386 = vsel %vm1030, %v2381, %v2385
    %v2387 = vrot.slane %v2302, 1
    %v2388 = vsel %vm1030, %v2383, %v2387
    %v2389 = vrot.slane %v2303, 1
    %v2390 = vsel %vm1030, %v2385, %v2389
    %v2391 = vrot.slane %v2304, 1
    %v2392 = vsel %vm1030, %v2387, %v2391
    %v2393 = vrot.slane %v2305, 1
    %v2394 = vsel %vm1030, %v2389, %v2393
    %v2395 = vrot.slane %v2306, 1
    %v2396 = vsel %vm1030, %v2391, %v2395
    %v2397 = vrot.slane %v2307, 1
    %v2398 = vsel %vm1030, %v2393, %v2397
    %v2399 = vrot.slane %v2308, 1
    %v2400 = vsel %vm1030, %v2395, %v2399
    %v2401 = vrot.slane %v2309, 1
    %v2402 = vsel %vm1030, %v2397, %v2401
    %v2403 = vrot.slane %v2310, 1
    %v2404 = vsel %vm1030, %v2399, %v2403
    %v2421 = vsel %vm1030, %v2401, 0.0
    %v2422 = vsel %vm1030, %v2403, 0.0
    %v2423 = vadd.f32 %v2297, 0.0
    %v2424 = vadd.f32 %v2298, 0.0
    %v2425 = vadd.f32 %v2295, %v2299
    %v2426 = vadd.f32 %v2296, %v2300
    %v2427 = vadd.f32 %v2297, %v2301
    %v2428 = vadd.f32 %v2298, %v2302
    %v2429 = vadd.f32 %v2299, %v2303
    %v2430 = vadd.f32 %v2300, %v2304
    %v2431 = vadd.f32 %v2301, %v2305
    %v2432 = vadd.f32 %v2302, %v2306
    %v2433 = vadd.f32 %v2303, %v2307
    %v2434 = vadd.f32 %v2304, %v2308
    %v2435 = vadd.f32 %v2305, %v2309
    %v2436 = vadd.f32 %v2306, %v2310
    %v2437 = vadd.f32 %v2307, 0.0
    %v2438 = vadd.f32 %v2308, 0.0
    %v2439 = vsel %vm917, %v2373, 0.0
    %v2440 = vsel %vm917, %v2374, 0.0
    %v2441 = vsel %vm918, %v2330, 0.0
    %v2442 = vsel %vm918, %v2332, 0.0
    %v2443 = vsel %vm919, %v2334, 0.0
    %v2444 = vsel %vm919, %v2336, 0.0
    %v2445 = vsel %vm920, %v2338, 0.0
    %v2446 = vsel %vm920, %v2340, 0.0
    %v2447 = vsel %vm921, %v2342, 0.0
    %v2448 = vsel %vm921, %v2344, 0.0
    %v2449 = vsel %vm922, %v2346, 0.0
    %v2450 = vsel %vm922, %v2348, 0.0
    %v2451 = vsel %vm923, %v2350, 0.0
    %v2452 = vsel %vm923, %v2352, 0.0
    %v2453 = vsel %vm924, %v2354, 0.0
    %v2454 = vsel %vm924, %v2356, 0.0
    %v2455 = vadd.f32 %v2423, %v2439
    %v2456 = vadd.f32 %v2424, %v2440
    %v2457 = vadd.f32 %v2425, %v2441
    %v2458 = vadd.f32 %v2426, %v2442
    %v2459 = vadd.f32 %v2427, %v2443
    %v2460 = vadd.f32 %v2428, %v2444
    %v2461 = vadd.f32 %v2429, %v2445
    %v2462 = vadd.f32 %v2430, %v2446
    %v2463 = vadd.f32 %v2431, %v2447
    %v2464 = vadd.f32 %v2432, %v2448
    %v2465 = vadd.f32 %v2433, %v2449
    %v2466 = vadd.f32 %v2434, %v2450
    %v2467 = vadd.f32 %v2435, %v2451
    %v2468 = vadd.f32 %v2436, %v2452
    %v2469 = vadd.f32 %v2437, %v2453
    %v2470 = vadd.f32 %v2438, %v2454
    %v2471 = vsel %vm925, %v2377, 0.0
    %v2472 = vsel %vm925, %v2380, 0.0
    %v2473 = vsel %vm926, %v2382, 0.0
    %v2474 = vsel %vm926, %v2384, 0.0
    %v2475 = vsel %vm927, %v2386, 0.0
    %v2476 = vsel %vm927, %v2388, 0.0
    %v2477 = vsel %vm928, %v2390, 0.0
    %v2478 = vsel %vm928, %v2392, 0.0
    %v2479 = vsel %vm929, %v2394, 0.0
    %v2480 = vsel %vm929, %v2396, 0.0
    %v2481 = vsel %vm930, %v2398, 0.0
    %v2482 = vsel %vm930, %v2400, 0.0
    %v2483 = vsel %vm931, %v2402, 0.0
    %v2484 = vsel %vm931, %v2404, 0.0
    %v2485 = vsel %vm932, %v2421, 0.0
    %v2486 = vsel %vm932, %v2422, 0.0
    %v2487 = vadd.f32 %v2455, %v2471
    %v2488 = vadd.f32 %v2456, %v2472
    %v2489 = vadd.f32 %v2457, %v2473
    %v2490 = vadd.f32 %v2458, %v2474
    %v2491 = vadd.f32 %v2459, %v2475
    %v2492 = vadd.f32 %v2460, %v2476
    %v2493 = vadd.f32 %v2461, %v2477
    %v2494 = vadd.f32 %v2462, %v2478
    %v2495 = vadd.f32 %v2463, %v2479
    %v2496 = vadd.f32 %v2464, %v2480
    %v2497 = vadd.f32 %v2465, %v2481
    %v2498 = vadd.f32 %v2466, %v2482
    %v2499 = vadd.f32 %v2467, %v2483
    %v2500 = vadd.f32 %v2468, %v2484
    %v2501 = vadd.f32 %v2469, %v2485
    %v2502 = vadd.f32 %v2470, %v2486
    %v2503 = vmul.f32 %v796, %v2487
    %v2504 = vmul.f32 %v797, %v2488
    %v2505 = vmul.f32 %v798, %v2489
    %v2506 = vmul.f32 %v799, %v2490
    %v2507 = vmul.f32 %v800, %v2491
    %v2508 = vmul.f32 %v801, %v2492
    %v2509 = vmul.f32 %v802, %v2493
    %v2510 = vmul.f32 %v803, %v2494
    %v2511 = vmul.f32 %v804, %v2495
    %v2512 = vmul.f32 %v805, %v2496
    %v2513 = vmul.f32 %v806, %v2497
    %v2514 = vmul.f32 %v807, %v2498
    %v2515 = vmul.f32 %v808, %v2499
    %v2516 = vmul.f32 %v809, %v2500
    %v2517 = vmul.f32 %v810, %v2501
    %v2518 = vmul.f32 %v811, %v2502
    %v2519 = vadd.f32 %v780, %v2503
    %v2520 = vadd.f32 %v781, %v2504
    %v2521 = vadd.f32 %v782, %v2505
    %v2522 = vadd.f32 %v783, %v2506
    %v2523 = vadd.f32 %v784, %v2507
    %v2524 = vadd.f32 %v785, %v2508
    %v2525 = vadd.f32 %v786, %v2509
    %v2526 = vadd.f32 %v787, %v2510
    %v2527 = vadd.f32 %v788, %v2511
    %v2528 = vadd.f32 %v789, %v2512
    %v2529 = vadd.f32 %v790, %v2513
    %v2530 = vadd.f32 %v791, %v2514
    %v2531 = vadd.f32 %v792, %v2515
    %v2532 = vadd.f32 %v793, %v2516
    %v2533 = vadd.f32 %v794, %v2517
    %v2534 = vadd.f32 %v795, %v2518
    %v2551 = vrot.slane %v2519, 7
    %v2552 = vrot.slane %v2520, 7
    %v2553 = vrot.slane %v2521, 7
    %v2554 = vsel %vm981, %v2551, %v2553
    %v2555 = vrot.slane %v2522, 7
    %v2556 = vsel %vm981, %v2552, %v2555
    %v2557 = vrot.slane %v2523, 7
    %v2558 = vsel %vm981, %v2553, %v2557
    %v2559 = vrot.slane %v2524, 7
    %v2560 = vsel %vm981, %v2555, %v2559
    %v2561 = vrot.slane %v2525, 7
    %v2562 = vsel %vm981, %v2557, %v2561
    %v2563 = vrot.slane %v2526, 7
    %v2564 = vsel %vm981, %v2559, %v2563
    %v2565 = vrot.slane %v2527, 7
    %v2566 = vsel %vm981, %v2561, %v2565
    %v2567 = vrot.slane %v2528, 7
    %v2568 = vsel %vm981, %v2563, %v2567
    %v2569 = vrot.slane %v2529, 7
    %v2570 = vsel %vm981, %v2565, %v2569
    %v2571 = vrot.slane %v2530, 7
    %v2572 = vsel %vm981, %v2567, %v2571
    %v2573 = vrot.slane %v2531, 7
    %v2574 = vsel %vm981, %v2569, %v2573
    %v2575 = vrot.slane %v2532, 7
    %v2576 = vsel %vm981, %v2571, %v2575
    %v2577 = vrot.slane %v2533, 7
    %v2578 = vsel %vm981, %v2573, %v2577
    %v2579 = vrot.slane %v2534, 7
    %v2580 = vsel %vm981, %v2575, %v2579
    %v2597 = vsel %vm981, 0.0, %v2551
    %v2598 = vsel %vm981, 0.0, %v2552
    %v2599 = vrot.slane %v2519, 1
    %v2600 = vrot.slane %v2521, 1
    %v2601 = vsel %vm1030, %v2599, %v2600
    %v2602 = vrot.slane %v2520, 1
    %v2603 = vrot.slane %v2522, 1
    %v2604 = vsel %vm1030, %v2602, %v2603
    %v2605 = vrot.slane %v2523, 1
    %v2606 = vsel %vm1030, %v2600, %v2605
    %v2607 = vrot.slane %v2524, 1
    %v2608 = vsel %vm1030, %v2603, %v2607
    %v2609 = vrot.slane %v2525, 1
    %v2610 = vsel %vm1030, %v2605, %v2609
    %v2611 = vrot.slane %v2526, 1
    %v2612 = vsel %vm1030, %v2607, %v2611
    %v2613 = vrot.slane %v2527, 1
    %v2614 = vsel %vm1030, %v2609, %v2613
    %v2615 = vrot.slane %v2528, 1
    %v2616 = vsel %vm1030, %v2611, %v2615
    %v2617 = vrot.slane %v2529, 1
    %v2618 = vsel %vm1030, %v2613, %v2617
    %v2619 = vrot.slane %v2530, 1
    %v2620 = vsel %vm1030, %v2615, %v2619
    %v2621 = vrot.slane %v2531, 1
    %v2622 = vsel %vm1030, %v2617, %v2621
    %v2623 = vrot.slane %v2532, 1
    %v2624 = vsel %vm1030, %v2619, %v2623
    %v2625 = vrot.slane %v2533, 1
    %v2626 = vsel %vm1030, %v2621, %v2625
    %v2627 = vrot.slane %v2534, 1
    %v2628 = vsel %vm1030, %v2623, %v2627
    %v2645 = vsel %vm1030, %v2625, 0.0
    %v2646 = vsel %vm1030, %v2627, 0.0
    %v2647 = vadd.f32 %v2521, 0.0
    %v2648 = vadd.f32 %v2522, 0.0
    %v2649 = vadd.f32 %v2519, %v2523
    %v2650 = vadd.f32 %v2520, %v2524
    %v2651 = vadd.f32 %v2521, %v2525
    %v2652 = vadd.f32 %v2522, %v2526
    %v2653 = vadd.f32 %v2523, %v2527
    %v2654 = vadd.f32 %v2524, %v2528
    %v2655 = vadd.f32 %v2525, %v2529
    %v2656 = vadd.f32 %v2526, %v2530
    %v2657 = vadd.f32 %v2527, %v2531
    %v2658 = vadd.f32 %v2528, %v2532
    %v2659 = vadd.f32 %v2529, %v2533
    %v2660 = vadd.f32 %v2530, %v2534
    %v2661 = vadd.f32 %v2531, 0.0
    %v2662 = vadd.f32 %v2532, 0.0
    %v2663 = vsel %vm917, %v2597, 0.0
    %v2664 = vsel %vm917, %v2598, 0.0
    %v2665 = vsel %vm918, %v2554, 0.0
    %v2666 = vsel %vm918, %v2556, 0.0
    %v2667 = vsel %vm919, %v2558, 0.0
    %v2668 = vsel %vm919, %v2560, 0.0
    %v2669 = vsel %vm920, %v2562, 0.0
    %v2670 = vsel %vm920, %v2564, 0.0
    %v2671 = vsel %vm921, %v2566, 0.0
    %v2672 = vsel %vm921, %v2568, 0.0
    %v2673 = vsel %vm922, %v2570, 0.0
    %v2674 = vsel %vm922, %v2572, 0.0
    %v2675 = vsel %vm923, %v2574, 0.0
    %v2676 = vsel %vm923, %v2576, 0.0
    %v2677 = vsel %vm924, %v2578, 0.0
    %v2678 = vsel %vm924, %v2580, 0.0
    %v2679 = vadd.f32 %v2647, %v2663
    %v2680 = vadd.f32 %v2648, %v2664
    %v2681 = vadd.f32 %v2649, %v2665
    %v2682 = vadd.f32 %v2650, %v2666
    %v2683 = vadd.f32 %v2651, %v2667
    %v2684 = vadd.f32 %v2652, %v2668
    %v2685 = vadd.f32 %v2653, %v2669
    %v2686 = vadd.f32 %v2654, %v2670
    %v2687 = vadd.f32 %v2655, %v2671
    %v2688 = vadd.f32 %v2656, %v2672
    %v2689 = vadd.f32 %v2657, %v2673
    %v2690 = vadd.f32 %v2658, %v2674
    %v2691 = vadd.f32 %v2659, %v2675
    %v2692 = vadd.f32 %v2660, %v2676
    %v2693 = vadd.f32 %v2661, %v2677
    %v2694 = vadd.f32 %v2662, %v2678
    %v2695 = vsel %vm925, %v2601, 0.0
    %v2696 = vsel %vm925, %v2604, 0.0
    %v2697 = vsel %vm926, %v2606, 0.0
    %v2698 = vsel %vm926, %v2608, 0.0
    %v2699 = vsel %vm927, %v2610, 0.0
    %v2700 = vsel %vm927, %v2612, 0.0
    %v2701 = vsel %vm928, %v2614, 0.0
    %v2702 = vsel %vm928, %v2616, 0.0
    %v2703 = vsel %vm929, %v2618, 0.0
    %v2704 = vsel %vm929, %v2620, 0.0
    %v2705 = vsel %vm930, %v2622, 0.0
    %v2706 = vsel %vm930, %v2624, 0.0
    %v2707 = vsel %vm931, %v2626, 0.0
    %v2708 = vsel %vm931, %v2628, 0.0
    %v2709 = vsel %vm932, %v2645, 0.0
    %v2710 = vsel %vm932, %v2646, 0.0
    %v2711 = vadd.f32 %v2679, %v2695
    %v2712 = vadd.f32 %v2680, %v2696
    %v2713 = vadd.f32 %v2681, %v2697
    %v2714 = vadd.f32 %v2682, %v2698
    %v2715 = vadd.f32 %v2683, %v2699
    %v2716 = vadd.f32 %v2684, %v2700
    %v2717 = vadd.f32 %v2685, %v2701
    %v2718 = vadd.f32 %v2686, %v2702
    %v2719 = vadd.f32 %v2687, %v2703
    %v2720 = vadd.f32 %v2688, %v2704
    %v2721 = vadd.f32 %v2689, %v2705
    %v2722 = vadd.f32 %v2690, %v2706
    %v2723 = vadd.f32 %v2691, %v2707
    %v2724 = vadd.f32 %v2692, %v2708
    %v2725 = vadd.f32 %v2693, %v2709
    %v2726 = vadd.f32 %v2694, %v2710
    %v2727 = vmul.f32 %v796, %v2711
    %v2728 = vmul.f32 %v797, %v2712
    %v2729 = vmul.f32 %v798, %v2713
    %v2730 = vmul.f32 %v799, %v2714
    %v2731 = vmul.f32 %v800, %v2715
    %v2732 = vmul.f32 %v801, %v2716
    %v2733 = vmul.f32 %v802, %v2717
    %v2734 = vmul.f32 %v803, %v2718
    %v2735 = vmul.f32 %v804, %v2719
    %v2736 = vmul.f32 %v805, %v2720
    %v2737 = vmul.f32 %v806, %v2721
    %v2738 = vmul.f32 %v807, %v2722
    %v2739 = vmul.f32 %v808, %v2723
    %v2740 = vmul.f32 %v809, %v2724
    %v2741 = vmul.f32 %v810, %v2725
    %v2742 = vmul.f32 %v811, %v2726
    %v2743 = vadd.f32 %v780, %v2727
    %v2744 = vadd.f32 %v781, %v2728
    %v2745 = vadd.f32 %v782, %v2729
    %v2746 = vadd.f32 %v783, %v2730
    %v2747 = vadd.f32 %v784, %v2731
    %v2748 = vadd.f32 %v785, %v2732
    %v2749 = vadd.f32 %v786, %v2733
    %v2750 = vadd.f32 %v787, %v2734
    %v2751 = vadd.f32 %v788, %v2735
    %v2752 = vadd.f32 %v789, %v2736
    %v2753 = vadd.f32 %v790, %v2737
    %v2754 = vadd.f32 %v791, %v2738
    %v2755 = vadd.f32 %v792, %v2739
    %v2756 = vadd.f32 %v793, %v2740
    %v2757 = vadd.f32 %v794, %v2741
    %v2758 = vadd.f32 %v795, %v2742
    %v2775 = vrot.slane %v2743, 7
    %v2776 = vrot.slane %v2744, 7
    %v2777 = vrot.slane %v2745, 7
    %v2778 = vsel %vm981, %v2775, %v2777
    %v2779 = vrot.slane %v2746, 7
    %v2780 = vsel %vm981, %v2776, %v2779
    %v2781 = vrot.slane %v2747, 7
    %v2782 = vsel %vm981, %v2777, %v2781
    %v2783 = vrot.slane %v2748, 7
    %v2784 = vsel %vm981, %v2779, %v2783
    %v2785 = vrot.slane %v2749, 7
    %v2786 = vsel %vm981, %v2781, %v2785
    %v2787 = vrot.slane %v2750, 7
    %v2788 = vsel %vm981, %v2783, %v2787
    %v2789 = vrot.slane %v2751, 7
    %v2790 = vsel %vm981, %v2785, %v2789
    %v2791 = vrot.slane %v2752, 7
    %v2792 = vsel %vm981, %v2787, %v2791
    %v2793 = vrot.slane %v2753, 7
    %v2794 = vsel %vm981, %v2789, %v2793
    %v2795 = vrot.slane %v2754, 7
    %v2796 = vsel %vm981, %v2791, %v2795
    %v2797 = vrot.slane %v2755, 7
    %v2798 = vsel %vm981, %v2793, %v2797
    %v2799 = vrot.slane %v2756, 7
    %v2800 = vsel %vm981, %v2795, %v2799
    %v2801 = vrot.slane %v2757, 7
    %v2802 = vsel %vm981, %v2797, %v2801
    %v2803 = vrot.slane %v2758, 7
    %v2804 = vsel %vm981, %v2799, %v2803
    %v2821 = vsel %vm981, 0.0, %v2775
    %v2822 = vsel %vm981, 0.0, %v2776
    %v2823 = vrot.slane %v2743, 1
    %v2824 = vrot.slane %v2745, 1
    %v2825 = vsel %vm1030, %v2823, %v2824
    %v2826 = vrot.slane %v2744, 1
    %v2827 = vrot.slane %v2746, 1
    %v2828 = vsel %vm1030, %v2826, %v2827
    %v2829 = vrot.slane %v2747, 1
    %v2830 = vsel %vm1030, %v2824, %v2829
    %v2831 = vrot.slane %v2748, 1
    %v2832 = vsel %vm1030, %v2827, %v2831
    %v2833 = vrot.slane %v2749, 1
    %v2834 = vsel %vm1030, %v2829, %v2833
    %v2835 = vrot.slane %v2750, 1
    %v2836 = vsel %vm1030, %v2831, %v2835
    %v2837 = vrot.slane %v2751, 1
    %v2838 = vsel %vm1030, %v2833, %v2837
    %v2839 = vrot.slane %v2752, 1
    %v2840 = vsel %vm1030, %v2835, %v2839
    %v2841 = vrot.slane %v2753, 1
    %v2842 = vsel %vm1030, %v2837, %v2841
    %v2843 = vrot.slane %v2754, 1
    %v2844 = vsel %vm1030, %v2839, %v2843
    %v2845 = vrot.slane %v2755, 1
    %v2846 = vsel %vm1030, %v2841, %v2845
    %v2847 = vrot.slane %v2756, 1
    %v2848 = vsel %vm1030, %v2843, %v2847
    %v2849 = vrot.slane %v2757, 1
    %v2850 = vsel %vm1030, %v2845, %v2849
    %v2851 = vrot.slane %v2758, 1
    %v2852 = vsel %vm1030, %v2847, %v2851
    %v2869 = vsel %vm1030, %v2849, 0.0
    %v2870 = vsel %vm1030, %v2851, 0.0
    %v2871 = vadd.f32 %v2745, 0.0
    %v2872 = vadd.f32 %v2746, 0.0
    %v2873 = vadd.f32 %v2743, %v2747
    %v2874 = vadd.f32 %v2744, %v2748
    %v2875 = vadd.f32 %v2745, %v2749
    %v2876 = vadd.f32 %v2746, %v2750
    %v2877 = vadd.f32 %v2747, %v2751
    %v2878 = vadd.f32 %v2748, %v2752
    %v2879 = vadd.f32 %v2749, %v2753
    %v2880 = vadd.f32 %v2750, %v2754
    %v2881 = vadd.f32 %v2751, %v2755
    %v2882 = vadd.f32 %v2752, %v2756
    %v2883 = vadd.f32 %v2753, %v2757
    %v2884 = vadd.f32 %v2754, %v2758
    %v2885 = vadd.f32 %v2755, 0.0
    %v2886 = vadd.f32 %v2756, 0.0
    %v2887 = vsel %vm917, %v2821, 0.0
    %v2888 = vsel %vm917, %v2822, 0.0
    %v2889 = vsel %vm918, %v2778, 0.0
    %v2890 = vsel %vm918, %v2780, 0.0
    %v2891 = vsel %vm919, %v2782, 0.0
    %v2892 = vsel %vm919, %v2784, 0.0
    %v2893 = vsel %vm920, %v2786, 0.0
    %v2894 = vsel %vm920, %v2788, 0.0
    %v2895 = vsel %vm921, %v2790, 0.0
    %v2896 = vsel %vm921, %v2792, 0.0
    %v2897 = vsel %vm922, %v2794, 0.0
    %v2898 = vsel %vm922, %v2796, 0.0
    %v2899 = vsel %vm923, %v2798, 0.0
    %v2900 = vsel %vm923, %v2800, 0.0
    %v2901 = vsel %vm924, %v2802, 0.0
    %v2902 = vsel %vm924, %v2804, 0.0
    %v2903 = vadd.f32 %v2871, %v2887
    %v2904 = vadd.f32 %v2872, %v2888
    %v2905 = vadd.f32 %v2873, %v2889
    %v2906 = vadd.f32 %v2874, %v2890
    %v2907 = vadd.f32 %v2875, %v2891
    %v2908 = vadd.f32 %v2876, %v2892
    %v2909 = vadd.f32 %v2877, %v2893
    %v2910 = vadd.f32 %v2878, %v2894
    %v2911 = vadd.f32 %v2879, %v2895
    %v2912 = vadd.f32 %v2880, %v2896
    %v2913 = vadd.f32 %v2881, %v2897
    %v2914 = vadd.f32 %v2882, %v2898
    %v2915 = vadd.f32 %v2883, %v2899
    %v2916 = vadd.f32 %v2884, %v2900
    %v2917 = vadd.f32 %v2885, %v2901
    %v2918 = vadd.f32 %v2886, %v2902
    %v2919 = vsel %vm925, %v2825, 0.0
    %v2920 = vsel %vm925, %v2828, 0.0
    %v2921 = vsel %vm926, %v2830, 0.0
    %v2922 = vsel %vm926, %v2832, 0.0
    %v2923 = vsel %vm927, %v2834, 0.0
    %v2924 = vsel %vm927, %v2836, 0.0
    %v2925 = vsel %vm928, %v2838, 0.0
    %v2926 = vsel %vm928, %v2840, 0.0
    %v2927 = vsel %vm929, %v2842, 0.0
    %v2928 = vsel %vm929, %v2844, 0.0
    %v2929 = vsel %vm930, %v2846, 0.0
    %v2930 = vsel %vm930, %v2848, 0.0
    %v2931 = vsel %vm931, %v2850, 0.0
    %v2932 = vsel %vm931, %v2852, 0.0
    %v2933 = vsel %vm932, %v2869, 0.0
    %v2934 = vsel %vm932, %v2870, 0.0
    %v2935 = vadd.f32 %v2903, %v2919
    %v2936 = vadd.f32 %v2904, %v2920
    %v2937 = vadd.f32 %v2905, %v2921
    %v2938 = vadd.f32 %v2906, %v2922
    %v2939 = vadd.f32 %v2907, %v2923
    %v2940 = vadd.f32 %v2908, %v2924
    %v2941 = vadd.f32 %v2909, %v2925
    %v2942 = vadd.f32 %v2910, %v2926
    %v2943 = vadd.f32 %v2911, %v2927
    %v2944 = vadd.f32 %v2912, %v2928
    %v2945 = vadd.f32 %v2913, %v2929
    %v2946 = vadd.f32 %v2914, %v2930
    %v2947 = vadd.f32 %v2915, %v2931
    %v2948 = vadd.f32 %v2916, %v2932
    %v2949 = vadd.f32 %v2917, %v2933
    %v2950 = vadd.f32 %v2918, %v2934
    %v2951 = vmul.f32 %v796, %v2935
    %v2952 = vmul.f32 %v797, %v2936
    %v2953 = vmul.f32 %v798, %v2937
    %v2954 = vmul.f32 %v799, %v2938
    %v2955 = vmul.f32 %v800, %v2939
    %v2956 = vmul.f32 %v801, %v2940
    %v2957 = vmul.f32 %v802, %v2941
    %v2958 = vmul.f32 %v803, %v2942
    %v2959 = vmul.f32 %v804, %v2943
    %v2960 = vmul.f32 %v805, %v2944
    %v2961 = vmul.f32 %v806, %v2945
    %v2962 = vmul.f32 %v807, %v2946
    %v2963 = vmul.f32 %v808, %v2947
    %v2964 = vmul.f32 %v809, %v2948
    %v2965 = vmul.f32 %v810, %v2949
    %v2966 = vmul.f32 %v811, %v2950
    %v2967 = vadd.f32 %v780, %v2951
    %v2968 = vadd.f32 %v781, %v2952
    %v2969 = vadd.f32 %v782, %v2953
    %v2970 = vadd.f32 %v783, %v2954
    %v2971 = vadd.f32 %v784, %v2955
    %v2972 = vadd.f32 %v785, %v2956
    %v2973 = vadd.f32 %v786, %v2957
    %v2974 = vadd.f32 %v787, %v2958
    %v2975 = vadd.f32 %v788, %v2959
    %v2976 = vadd.f32 %v789, %v2960
    %v2977 = vadd.f32 %v790, %v2961
    %v2978 = vadd.f32 %v791, %v2962
    %v2979 = vadd.f32 %v792, %v2963
    %v2980 = vadd.f32 %v793, %v2964
    %v2981 = vadd.f32 %v794, %v2965
    %v2982 = vadd.f32 %v795, %v2966
    %v2983 = vadd.f32 %v2967, %v2969
    %v2984 = vadd.f32 %v2983, %v2971
    %v2985 = vadd.f32 %v2984, %v2973
    %v2986 = vadd.f32 %v2985, %v2975
    %v2987 = vadd.f32 %v2986, %v2977
    %v2988 = vadd.f32 %v2987, %v2979
    %v2989 = vadd.f32 %v2988, %v2981
    %v2990 = vrot.slane %v2989, 4
    %v2991 = vadd.f32 %v2989, %v2990
    %v2992 = vrot.slane %v2991, 2
    %v2993 = vadd.f32 %v2991, %v2992
    %v2994 = vrot.slane %v2993, 1
    %v2995 = vadd.f32 %v2993, %v2994
    %v2996 = vadd.f32 %v2968, %v2970
    %v2997 = vadd.f32 %v2996, %v2972
    %v2998 = vadd.f32 %v2997, %v2974
    %v2999 = vadd.f32 %v2998, %v2976
    %v3000 = vadd.f32 %v2999, %v2978
    %v3001 = vadd.f32 %v3000, %v2980
    %v3002 = vadd.f32 %v3001, %v2982
    %v3003 = vrot.slane %v3002, 4
    %v3004 = vadd.f32 %v3002, %v3003
    %v3005 = vrot.slane %v3004, 2
    %v3006 = vadd.f32 %v3004, %v3005
    %v3007 = vrot.slane %v3006, 1
    %v3008 = vadd.f32 %v3006, %v3007
    %v3009 = vmul.f32 %v2995, 0.015625
    %v3010 = vmul.f32 %v3008, 0.015625
    %v3013 = vcombine.low %v3009, %v3010
    %v3015 = vunpack.c.l.s4 1966171168
    %v3016 = vunpack.c.0.s8 %v3015
    %v3017 = vlaneseq
    %v3018 = vshrl.u32 %v3017, 7
    %v3019 = vsub.s32 %v3016, %v3018
    %v3020 = vrot.slane %v3013, %v3019
    %v3022 = vunpack.c.l.s4 1966171168
    %v3023 = vunpack.c.0.s8 %v3022
    %v3024 = vlaneseq
    %v3025 = vshrl.u32 %v3024, 7
    %v3026 = vsub.s32 %v3023, %v3025
    %v3027 = vrot.slane %v3020, %v3026
    %v3029 = vlaneseq
    %vm3030 = vcmp.ge.s32.totalorder %v3029, 0
    %vm3031 = vcmp.lt.s32.totalorder %v3029, 256
    %vm3032 = vmand %vm3030, %vm3031
    %3033 = vst.msk [vmem:[#allocation8] sm:$0x3] %vm3032, %v3027
    // Predicated region
    $region34: #{tpu_custom_call.1} parent=1 // pred_check
      _
    $region35: #{tpu_custom_call.1} parent=1 // pred_check_branch
      %3035 = sbr.rel (0) target = $region37
    $region36: #{tpu_custom_call.1} parent=1 // pred_region
      %s3037 = ssub.s32 32, 32
      %3038 = vsyncadd [#allocation5], %s3037
      %s3040 = sshll.u32 [#allocation8], 4
      %s3041 = int_to_ptr.vmem [resolvable:$true] %s3040
      %3043 = dma.vmem_to_hbm [thread:$0]  %s3041, 32, %s6, [#allocation5]
    $region37: #{tpu_custom_call.1} parent=1 // pred_fallthru
      _
    // Predicated region
    $region38: #{tpu_custom_call.1} parent=1 // pred_check
      _
    $region39: #{tpu_custom_call.1} parent=1 // pred_check_branch
      %3045 = sbr.rel (0) target = $region41
    $region40: #{tpu_custom_call.1} parent=1 // pred_region
      %3046 = dma.done [#allocation5], 32
    $region41: #{tpu_custom_call.1} parent=1 // pred_fallthru
      _
    %3047 = vsyncpa [#allocation4], 1
    %3048 = vsyncpa [#allocation7], 1
    %3049 = vsyncpa [#allocation5], 1

</llo_original>
